<compile_context>
chip_gen: v7x
topology: tpu7x:2x2x1
jax: 0.10.0
libtpu: 0.0.40
codegen_flags: <defaults>
</compile_context>

<pallas_src>
import functools
from typing import NamedTuple

import jax
import jax.numpy as jnp
from jax.experimental import pallas as pl
from jax.experimental.pallas import tpu as pltpu

LN_EPS = 1e-5   # nn.LayerNorm default
LANES = 128


class Dims(NamedTuple):
    R: int   # repr_dim
    F: int   # feature_dim
    H: int   # hidden_dim
    A: int   # action_dim
    N: int   # lane-aligned padded width


def _round_up(x, m):
    return (x + m - 1) // m * m


def _num_tensorcores():
    """Best-effort TensorCore count per chip (v7x has 2, v5e/v6e have 1)."""
    try:
        kind = jax.devices()[0].device_kind.lower()
        if "v7" in kind:
            return 2
    except Exception:
        pass
    return 1


def _actor_kernel(feature_dim, repr_dim, obs_ref, w_ref, v_ref, mu_ref):
    """obs_ref: [BM, R]   w_ref: [4, N, N]  (wt, w1, w2, w3 zero-padded)
    v_ref: [8, N]  rows = (bt, ln_g, ln_b, b1, b2, b3, 0, 0)   mu_ref: [BM, N]."""
    x = obs_ref[...]                                   # [bm, R] -- unpadded obs
    inv_f = 1.0 / float(feature_dim)

    # ---- trunk: Linear -> LayerNorm(feature_dim) -> Tanh ----
    # Static view of the first weight's real rows (free; avoids a padded obs slab).
    w0 = w_ref[0, :repr_dim, :]                        # [R, N]
    h = jnp.dot(x, w0, preferred_element_type=jnp.float32) + v_ref[0:1, :]
    # Padded columns of h are exactly 0 (padded weight cols / bias are 0), so
    # full-width sums equal sums over the real feature_dim columns.  One-pass
    # stats: mean = E[x], var = E[x^2] - mean^2 (independent reductions).
    s1 = jnp.sum(h, axis=-1, keepdims=True)
    s2 = jnp.sum(h * h, axis=-1, keepdims=True)
    mean = s1 * inv_f
    var = s2 * inv_f - mean * mean
    h = (h - mean) * jax.lax.rsqrt(var + LN_EPS)
    # Padded gamma/beta are 0 -> padded columns are forced back to exactly 0.
    h = jnp.tanh(h * v_ref[1:2, :] + v_ref[2:3, :])

    # ---- policy MLP: Linear -> ReLU -> Linear -> ReLU -> Linear -> Tanh ----
    h = jnp.maximum(
        jnp.dot(h, w_ref[1], preferred_element_type=jnp.float32) + v_ref[3:4, :], 0.0)
    h = jnp.maximum(
        jnp.dot(h, w_ref[2], preferred_element_type=jnp.float32) + v_ref[4:5, :], 0.0)
    mu = jnp.tanh(
        jnp.dot(h, w_ref[3], preferred_element_type=jnp.float32) + v_ref[5:6, :])

    mu_ref[...] = mu                                    # lane-dense [bm, N] store


def pack_params(params):
    """Pack the 10 parameter tensors into two lane-aligned arrays.

    Done ONCE (off the per-step path).  Weights are stored [in, out] so the
    kernel computes x @ W + b (== PyTorch x @ W.T with W:[out, in]).  Zero
    padding of weight rows/cols, biases and LN gamma/beta keeps padded columns
    of every intermediate exactly 0.
    """
    R, F = params["wt"].shape
    H = params["w1"].shape[1]
    A = params["w3"].shape[1]
    N = _round_up(max(R, F, H, A), LANES)

    def pad_w(w):
        out = jnp.zeros((N, N), jnp.float32)
        return out.at[: w.shape[0], : w.shape[1]].set(w.astype(jnp.float32))

    def pad_v(v):
        v = jnp.ravel(v).astype(jnp.float32)
        out = jnp.zeros((N,), jnp.float32)
        return out.at[: v.shape[0]].set(v)

    w_all = jnp.stack([pad_w(params["wt"]), pad_w(params["w1"]),
                       pad_w(params["w2"]), pad_w(params["w3"])])
    zeros = jnp.zeros((N,), jnp.float32)
    v_all = jnp.stack([pad_v(params["bt"]), pad_v(params["ln_g"]), pad_v(params["ln_b"]),
                       pad_v(params["b1"]), pad_v(params["b2"]), pad_v(params["b3"]),
                       zeros, zeros])
    return w_all, v_all, Dims(R=R, F=F, H=H, A=A, N=N)


@functools.partial(jax.jit, static_argnames=("dims", "block_b"))
def actor_forward(obs, std, w_all, v_all, *, dims, block_b=512):
    """Returns (mu, std_arr) -- the TruncatedNormal parameters.

    Fully jitted: batch pad (usually a no-op), pallas_call, output slice and the
    constant std fill are one compiled dispatch.
    """
    B = obs.shape[0]
    R, F, A, N = dims.R, dims.F, dims.A, dims.N

    bm = min(block_b, _round_up(B, 8))           # batch tile (multiple of 8)
    b_pad = _round_up(B, bm)

    obs = obs.astype(jnp.float32)
    if b_pad != B:                               # static; skipped when divisible
        obs = jnp.pad(obs, ((0, b_pad - B), (0, 0)))

    grid = (b_pad // bm,)
    kernel = functools.partial(_actor_kernel, F, R)

    mu_pad = pl.pallas_call(
        kernel,
        out_shape=jax.ShapeDtypeStruct((b_pad, N), jnp.float32),
        grid=grid,
        in_specs=[
            # obs unpadded: last block dim == full array dim (R), so legal.
            pl.BlockSpec((bm, R), lambda i: (i, 0)),
            pl.BlockSpec((4, N, N), lambda i: (0, 0, 0)),   # packed weights, resident
            pl.BlockSpec((8, N), lambda i: (0, 0)),         # packed bias/LN vectors, resident
        ],
        out_specs=pl.BlockSpec((bm, N), lambda i: (i, 0)),  # lane-dense output slab
        compiler_params=pltpu.CompilerParams(
            dimension_semantics=("parallel",)),             # v7x: split batch across 2 TCs
    )(obs, w_all, v_all)

    mu = mu_pad[:B, :A]
    # std is a constant fill with no kernel dependency -> fused under this jit.
    std_arr = jnp.full((B, A), std, dtype=mu.dtype)
    return mu, std_arr


def init_params(key, repr_dim, action_dim, feature_dim, hidden_dim):
    """Deterministic synthetic init (stands in for utils.weight_init)."""
    ks = jax.random.split(key, 4)
    scale = 0.1
    return {
        "wt":   scale * jax.random.normal(ks[0], (repr_dim, feature_dim), jnp.float32),
        "bt":   jnp.zeros((feature_dim,), jnp.float32),
        "ln_g": jnp.ones((feature_dim,), jnp.float32),    # LayerNorm weight
        "ln_b": jnp.zeros((feature_dim,), jnp.float32),   # LayerNorm bias
        "w1":   scale * jax.random.normal(ks[1], (feature_dim, hidden_dim), jnp.float32),
        "b1":   jnp.zeros((hidden_dim,), jnp.float32),
        "w2":   scale * jax.random.normal(ks[2], (hidden_dim, hidden_dim), jnp.float32),
        "b2":   jnp.zeros((hidden_dim,), jnp.float32),
        "w3":   scale * jax.random.normal(ks[3], (hidden_dim, action_dim), jnp.float32),
        "b3":   jnp.zeros((action_dim,), jnp.float32),
    }


def actor_reference(obs, std, params):
    """Pure-JAX reference for correctness checking."""
    h = obs @ params["wt"] + params["bt"]
    mean = h.mean(-1, keepdims=True)
    var = ((h - mean) ** 2).mean(-1, keepdims=True)
    h = (h - mean) / jnp.sqrt(var + LN_EPS)
    h = h * params["ln_g"] + params["ln_b"]
    h = jnp.tanh(h)
    h = jnp.maximum(h @ params["w1"] + params["b1"], 0.0)
    h = jnp.maximum(h @ params["w2"] + params["b2"], 0.0)
    mu = jnp.tanh(h @ params["w3"] + params["b3"])
    return mu, jnp.ones_like(mu) * std


if __name__ == "__main__":
    # Small shapes consistent with the module: repr_dim=32, feature_dim=32,
    # hidden_dim=32, action_shape=(4,).  Batch=256 amortizes the fixed
    # pallas_call / DMA cost and exercises the batch tiling.
    B, REPR, FEAT, HID, ACT = 256, 32, 32, 32, 4

    key = jax.random.PRNGKey(0)
    k_obs, k_params = jax.random.split(key)

    obs = jax.random.normal(k_obs, (B, REPR), jnp.float32)
    params = init_params(k_params, REPR, ACT, FEAT, HID)
    std = 0.2

    w_all, v_all, dims = pack_params(params)          # one-time packing

    # One maximal tile per TensorCore: grid=(1,) on v5e/v6e, grid=(2,) on v7x.
    num_tc = _num_tensorcores()
    block_b = min(512, max(8, _round_up(-(-B // num_tc), 8)))

    mu, std_arr = actor_forward(obs, std, w_all, v_all, dims=dims, block_b=block_b)
    jax.block_until_ready((mu, std_arr))

    mu_ref, std_ref = actor_reference(obs, std, params)
    assert mu.shape == (B, ACT) and std_arr.shape == (B, ACT)
    assert jnp.allclose(mu, mu_ref, atol=1e-4, rtol=1e-4), \
        float(jnp.max(jnp.abs(mu - mu_ref)))
    assert jnp.allclose(std_arr, std_ref)

    print("KERNEL_OK")
</pallas_src>

<mosaic_0001>
module attributes {stable_mosaic.version = 11 : i64} {
  func.func @_actor_kernel(%arg0: i32, %arg1: memref<256x32xf32, #tpu.memory_space<vmem>>, %arg2: memref<4x128x128xf32, #tpu.memory_space<vmem>>, %arg3: memref<8x128xf32, #tpu.memory_space<vmem>>, %arg4: memref<256x128xf32, #tpu.memory_space<vmem>>) attributes {dimension_semantics = [#tpu.dimension_semantics<parallel>], iteration_bounds = array<i64: 1>, scalar_prefetch = 0 : i64, scratch_operands = 0 : i64, tpu.core_type = #tpu.core_type<tc>, window_params = [{transform_indices = @transform_0, window_bounds = array<i64: 256, 32>}, {pipeline_mode = #tpu.pipeline_mode<synchronous>, transform_indices = @transform_1, window_bounds = array<i64: 4, 128, 128>}, {pipeline_mode = #tpu.pipeline_mode<synchronous>, transform_indices = @transform_2, window_bounds = array<i64: 8, 128>}, {transform_indices = @transform_3, window_bounds = array<i64: 256, 128>}]} {
    %c0 = arith.constant 0 : index
    %c0_0 = arith.constant 0 : index
    %0 = vector.load %arg1[%c0, %c0_0] : memref<256x32xf32, #tpu.memory_space<vmem>>, vector<256x32xf32>
    %c0_1 = arith.constant 0 : index
    %c0_2 = arith.constant 0 : index
    %c0_3 = arith.constant 0 : index
    %1 = vector.load %arg2[%c0_1, %c0_2, %c0_3] : memref<4x128x128xf32, #tpu.memory_space<vmem>>, vector<1x32x128xf32>
    %2 = vector.shape_cast %1 : vector<1x32x128xf32> to vector<32x128xf32>
    %cst = arith.constant dense<0.000000e+00> : vector<256x128xf32>
    %3 = tpu.matmul %0, %2, %cst {dimension_numbers = #tpu.dot_dimension_numbers<[1], [0], [0], [1], [0, 0, 1, 1], [], []>} : vector<256x32xf32>, vector<32x128xf32>, vector<256x128xf32> -> vector<256x128xf32>
    %c0_4 = arith.constant 0 : index
    %c0_5 = arith.constant 0 : index
    %4 = vector.load %arg3[%c0_4, %c0_5] : memref<8x128xf32, #tpu.memory_space<vmem>>, vector<1x128xf32>
    %5 = vector.broadcast %4 : vector<1x128xf32> to vector<256x128xf32>
    %6 = arith.addf %3, %5 : vector<256x128xf32>
    %cst_6 = arith.constant dense<0.000000e+00> : vector<256xf32>
    %7 = vector.multi_reduction <add>, %6, %cst_6 [1] : vector<256x128xf32> to vector<256xf32>
    %8 = vector.shape_cast %7 : vector<256xf32> to vector<256x1xf32>
    %9 = arith.mulf %6, %6 : vector<256x128xf32>
    %cst_7 = arith.constant dense<0.000000e+00> : vector<256xf32>
    %10 = vector.multi_reduction <add>, %9, %cst_7 [1] : vector<256x128xf32> to vector<256xf32>
    %11 = vector.shape_cast %10 : vector<256xf32> to vector<256x1xf32>
    %cst_8 = arith.constant 3.125000e-02 : f32
    %12 = vector.broadcast %cst_8 : f32 to vector<256x1xf32>
    %13 = arith.mulf %8, %12 : vector<256x1xf32>
    %cst_9 = arith.constant 3.125000e-02 : f32
    %14 = vector.broadcast %cst_9 : f32 to vector<256x1xf32>
    %15 = arith.mulf %11, %14 : vector<256x1xf32>
    %16 = arith.mulf %13, %13 : vector<256x1xf32>
    %17 = arith.subf %15, %16 : vector<256x1xf32>
    %18 = vector.broadcast %13 : vector<256x1xf32> to vector<256x128xf32>
    %19 = arith.subf %6, %18 : vector<256x128xf32>
    %cst_10 = arith.constant 9.99999974E-6 : f32
    %20 = vector.broadcast %cst_10 : f32 to vector<256x1xf32>
    %21 = arith.addf %17, %20 : vector<256x1xf32>
    %22 = math.rsqrt %21 : vector<256x1xf32>
    %23 = vector.broadcast %22 : vector<256x1xf32> to vector<256x128xf32>
    %24 = arith.mulf %19, %23 : vector<256x128xf32>
    %c1 = arith.constant 1 : index
    %c0_11 = arith.constant 0 : index
    %25 = vector.load %arg3[%c1, %c0_11] : memref<8x128xf32, #tpu.memory_space<vmem>>, vector<1x128xf32>
    %26 = vector.broadcast %25 : vector<1x128xf32> to vector<256x128xf32>
    %27 = arith.mulf %24, %26 : vector<256x128xf32>
    %c2 = arith.constant 2 : index
    %c0_12 = arith.constant 0 : index
    %28 = vector.load %arg3[%c2, %c0_12] : memref<8x128xf32, #tpu.memory_space<vmem>>, vector<1x128xf32>
    %29 = vector.broadcast %28 : vector<1x128xf32> to vector<256x128xf32>
    %30 = arith.addf %27, %29 : vector<256x128xf32>
    %31 = math.tanh %30 : vector<256x128xf32>
    %c1_13 = arith.constant 1 : index
    %c0_14 = arith.constant 0 : index
    %c0_15 = arith.constant 0 : index
    %32 = vector.load %arg2[%c1_13, %c0_14, %c0_15] : memref<4x128x128xf32, #tpu.memory_space<vmem>>, vector<1x128x128xf32>
    %33 = vector.shape_cast %32 : vector<1x128x128xf32> to vector<128x128xf32>
    %cst_16 = arith.constant dense<0.000000e+00> : vector<256x128xf32>
    %34 = tpu.matmul %31, %33, %cst_16 {dimension_numbers = #tpu.dot_dimension_numbers<[1], [0], [0], [1], [0, 0, 1, 1], [], []>} : vector<256x128xf32>, vector<128x128xf32>, vector<256x128xf32> -> vector<256x128xf32>
    %c3 = arith.constant 3 : index
    %c0_17 = arith.constant 0 : index
    %35 = vector.load %arg3[%c3, %c0_17] : memref<8x128xf32, #tpu.memory_space<vmem>>, vector<1x128xf32>
    %36 = vector.broadcast %35 : vector<1x128xf32> to vector<256x128xf32>
    %37 = arith.addf %34, %36 : vector<256x128xf32>
    %cst_18 = arith.constant 0.000000e+00 : f32
    %38 = vector.broadcast %cst_18 : f32 to vector<256x128xf32>
    %39 = arith.maximumf %37, %38 : vector<256x128xf32>
    %c2_19 = arith.constant 2 : index
    %c0_20 = arith.constant 0 : index
    %c0_21 = arith.constant 0 : index
    %40 = vector.load %arg2[%c2_19, %c0_20, %c0_21] : memref<4x128x128xf32, #tpu.memory_space<vmem>>, vector<1x128x128xf32>
    %41 = vector.shape_cast %40 : vector<1x128x128xf32> to vector<128x128xf32>
    %cst_22 = arith.constant dense<0.000000e+00> : vector<256x128xf32>
    %42 = tpu.matmul %39, %41, %cst_22 {dimension_numbers = #tpu.dot_dimension_numbers<[1], [0], [0], [1], [0, 0, 1, 1], [], []>} : vector<256x128xf32>, vector<128x128xf32>, vector<256x128xf32> -> vector<256x128xf32>
    %c4 = arith.constant 4 : index
    %c0_23 = arith.constant 0 : index
    %43 = vector.load %arg3[%c4, %c0_23] : memref<8x128xf32, #tpu.memory_space<vmem>>, vector<1x128xf32>
    %44 = vector.broadcast %43 : vector<1x128xf32> to vector<256x128xf32>
    %45 = arith.addf %42, %44 : vector<256x128xf32>
    %cst_24 = arith.constant 0.000000e+00 : f32
    %46 = vector.broadcast %cst_24 : f32 to vector<256x128xf32>
    %47 = arith.maximumf %45, %46 : vector<256x128xf32>
    %c3_25 = arith.constant 3 : index
    %c0_26 = arith.constant 0 : index
    %c0_27 = arith.constant 0 : index
    %48 = vector.load %arg2[%c3_25, %c0_26, %c0_27] : memref<4x128x128xf32, #tpu.memory_space<vmem>>, vector<1x128x128xf32>
    %49 = vector.shape_cast %48 : vector<1x128x128xf32> to vector<128x128xf32>
    %cst_28 = arith.constant dense<0.000000e+00> : vector<256x128xf32>
    %50 = tpu.matmul %47, %49, %cst_28 {dimension_numbers = #tpu.dot_dimension_numbers<[1], [0], [0], [1], [0, 0, 1, 1], [], []>} : vector<256x128xf32>, vector<128x128xf32>, vector<256x128xf32> -> vector<256x128xf32>
    %c5 = arith.constant 5 : index
    %c0_29 = arith.constant 0 : index
    %51 = vector.load %arg3[%c5, %c0_29] : memref<8x128xf32, #tpu.memory_space<vmem>>, vector<1x128xf32>
    %52 = vector.broadcast %51 : vector<1x128xf32> to vector<256x128xf32>
    %53 = arith.addf %50, %52 : vector<256x128xf32>
    %54 = math.tanh %53 : vector<256x128xf32>
    %c0_30 = arith.constant 0 : index
    %c0_31 = arith.constant 0 : index
    %55 = vector.load %arg4[%c0_30, %c0_31] : memref<256x128xf32, #tpu.memory_space<vmem>>, vector<256x128xf32>
    tpu.vector_store %arg4[%c0_30, %c0_31], %54 {strides = array<i32>} : memref<256x128xf32, #tpu.memory_space<vmem>>, vector<256x128xf32>,
    return
  }
  func.func @transform_0(%arg0: i32) -> (i32, i32) {
    %c0_i32 = arith.constant 0 : i32
    %c0_i32_0 = arith.constant 0 : i32
    return %arg0, %c0_i32 : i32, i32
  }
  func.func @transform_1(%arg0: i32) -> (i32, i32, i32) {
    %c0_i32 = arith.constant 0 : i32
    %c0_i32_0 = arith.constant 0 : i32
    %c0_i32_1 = arith.constant 0 : i32
    %c0_i32_2 = arith.constant 0 : i32
    return %c0_i32, %c0_i32_0, %c0_i32_1 : i32, i32, i32
  }
  func.func @transform_2(%arg0: i32) -> (i32, i32) {
    %c0_i32 = arith.constant 0 : i32
    %c0_i32_0 = arith.constant 0 : i32
    %c0_i32_1 = arith.constant 0 : i32
    return %c0_i32, %c0_i32_0 : i32, i32
  }
  func.func @transform_3(%arg0: i32) -> (i32, i32) {
    %c0_i32 = arith.constant 0 : i32
    %c0_i32_0 = arith.constant 0 : i32
    return %arg0, %c0_i32 : i32, i32
  }
}

</mosaic_0001>

<llo_original>
// kernel: actor_forward.1
$region0: #{actor_forward.1}
  #allocation0 [shape = 'u32[]', space=smem, size = 0x4, offset = 0x4, fixed_abs, tag = 'smem constant byte address 0x4 - core index']
  #allocation1 [shape = 'u32[144,128]{1,0:T(1,128)}', space=vmem, size = 0x12000, scoped, tag = 'internal scratch']
  %s0 = inlined_call_operand.vmem [shape: f32[256,32], index: 0, kind: input, shape index: {}]
  %s1 = inlined_call_operand.hbm [shape: f32[4,128,128], index: 1, kind: input, shape index: {}]
  %s2 = inlined_call_operand.vmem [shape: f32[8,128], index: 2, kind: input, shape index: {}]
  %s3 = inlined_call_operand.vmem [shape: f32[256,128], index: 3, kind: output, shape index: {}]
  %s4 = sld [smem:[#allocation0]]
  $region26: #{actor_forward.1} parent=0
    _
  %s6 = ssub.s32 1, %s4
  %s7 = scalar_select 0, %s6, %s4
  $region1: #{actor_forward.1} parent=0
    #allocation2 [shape = 'u8[262144]{0}', space=vmem, size = 0x40000, scoped, tag = 'input window, operand 1, single buffered']
    #allocation3 [shape = 's32[1]{0}', space=sflag, size = 0x4, scoped, tag = 'scoped memory for actor_forward.1']
    %8 = vsyncpa [#allocation3], 0
    // Predicated region
    $region2: #{actor_forward.1} parent=1 // pred_check
      _
    $region3: #{actor_forward.1} parent=1 // pred_check_branch
      %10 = sbr.rel (0) target = $region5
    $region4: #{actor_forward.1} parent=1 // pred_region
      _
    $region5: #{actor_forward.1} parent=1 // pred_fallthru
      _
    // Predicated region
    $region6: #{actor_forward.1} parent=1 // pred_check
      _
    $region7: #{actor_forward.1} parent=1 // pred_check_branch
      %12 = sbr.rel (0) target = $region9
    $region8: #{actor_forward.1} parent=1 // pred_region
      %s14 = ssub.s32 8192, 8192
      %15 = vsyncadd [#allocation3], %s14
      %s16 = sshll.u32 [#allocation2], 4
      %s17 = int_to_ptr.vmem [resolvable:$true] %s16
      %22 = dma.hbm_to_vmem [thread:$0]  %s1, 8192, %s17, [#allocation3], 128, 128, 8
    $region9: #{actor_forward.1} parent=1 // pred_fallthru
      _
    // Predicated region
    $region10: #{actor_forward.1} parent=1 // pred_check
      _
    $region11: #{actor_forward.1} parent=1 // pred_check_branch
      %24 = sbr.rel (0) target = $region13
    $region12: #{actor_forward.1} parent=1 // pred_region
      _
    $region13: #{actor_forward.1} parent=1 // pred_fallthru
      _
    // Predicated region
    $region14: #{actor_forward.1} parent=1 // pred_check
      _
    $region15: #{actor_forward.1} parent=1 // pred_check_branch
      %26 = sbr.rel (0) target = $region17
    $region16: #{actor_forward.1} parent=1 // pred_region
      %27 = dma.done [#allocation3], 8192
    $region17: #{actor_forward.1} parent=1 // pred_fallthru
      _
    %v28 = vld [vmem:[%s0] sm:$0xff]
    %v29 = vld [vmem:[%s0 + $0x8] sm:$0xff]
    %v30 = vld [vmem:[%s0 + $0x10] sm:$0xff]
    %v31 = vld [vmem:[%s0 + $0x18] sm:$0xff]
    %v32 = vld [vmem:[%s0 + $0x20] sm:$0xff]
    %v33 = vld [vmem:[%s0 + $0x28] sm:$0xff]
    %v34 = vld [vmem:[%s0 + $0x30] sm:$0xff]
    %v35 = vld [vmem:[%s0 + $0x38] sm:$0xff]
    %v36 = vld [vmem:[%s0 + $0x40] sm:$0xff]
    %v37 = vld [vmem:[%s0 + $0x48] sm:$0xff]
    %v38 = vld [vmem:[%s0 + $0x50] sm:$0xff]
    %v39 = vld [vmem:[%s0 + $0x58] sm:$0xff]
    %v40 = vld [vmem:[%s0 + $0x60] sm:$0xff]
    %v41 = vld [vmem:[%s0 + $0x68] sm:$0xff]
    %v42 = vld [vmem:[%s0 + $0x70] sm:$0xff]
    %v43 = vld [vmem:[%s0 + $0x78] sm:$0xff]
    %v44 = vld [vmem:[%s0 + $0x80] sm:$0xff]
    %v45 = vld [vmem:[%s0 + $0x88] sm:$0xff]
    %v46 = vld [vmem:[%s0 + $0x90] sm:$0xff]
    %v47 = vld [vmem:[%s0 + $0x98] sm:$0xff]
    %v48 = vld [vmem:[%s0 + $0xa0] sm:$0xff]
    %v49 = vld [vmem:[%s0 + $0xa8] sm:$0xff]
    %v50 = vld [vmem:[%s0 + $0xb0] sm:$0xff]
    %v51 = vld [vmem:[%s0 + $0xb8] sm:$0xff]
    %v52 = vld [vmem:[%s0 + $0xc0] sm:$0xff]
    %v53 = vld [vmem:[%s0 + $0xc8] sm:$0xff]
    %v54 = vld [vmem:[%s0 + $0xd0] sm:$0xff]
    %v55 = vld [vmem:[%s0 + $0xd8] sm:$0xff]
    %v56 = vld [vmem:[%s0 + $0xe0] sm:$0xff]
    %v57 = vld [vmem:[%s0 + $0xe8] sm:$0xff]
    %v58 = vld [vmem:[%s0 + $0xf0] sm:$0xff]
    %v59 = vld [vmem:[%s0 + $0xf8] sm:$0xff]
    %v60 = vld [vmem:[#allocation2] sm:$0xff]
    %v61 = vld [vmem:[#allocation2 + $0x8] sm:$0xff]
    %v62 = vld [vmem:[#allocation2 + $0x10] sm:$0xff]
    %v63 = vld [vmem:[#allocation2 + $0x18] sm:$0xff]
    %v64 = vld [vmem:[%s2] sm:$0x1]
    %v65 = vlaneseq
    %v66 = vshrl.u32 %v65, 7
    %v67 = vsub.s32 0, %v66
    %v68 = vrot.slane %v64, %v67
    %vm69 = vcmask 261120
    %v71 = vsel %vm69, %v28, 0
    %v74 = vsel %vm69, %v29, 0
    %v77 = vsel %vm69, %v30, 0
    %v80 = vsel %vm69, %v31, 0
    %v83 = vsel %vm69, %v32, 0
    %v86 = vsel %vm69, %v33, 0
    %v89 = vsel %vm69, %v34, 0
    %v92 = vsel %vm69, %v35, 0
    %v95 = vsel %vm69, %v36, 0
    %v98 = vsel %vm69, %v37, 0
    %v101 = vsel %vm69, %v38, 0
    %v104 = vsel %vm69, %v39, 0
    %v107 = vsel %vm69, %v40, 0
    %v110 = vsel %vm69, %v41, 0
    %v113 = vsel %vm69, %v42, 0
    %v116 = vsel %vm69, %v43, 0
    %v119 = vsel %vm69, %v44, 0
    %v122 = vsel %vm69, %v45, 0
    %v125 = vsel %vm69, %v46, 0
    %v128 = vsel %vm69, %v47, 0
    %v131 = vsel %vm69, %v48, 0
    %v134 = vsel %vm69, %v49, 0
    %v137 = vsel %vm69, %v50, 0
    %v140 = vsel %vm69, %v51, 0
    %v143 = vsel %vm69, %v52, 0
    %v146 = vsel %vm69, %v53, 0
    %v149 = vsel %vm69, %v54, 0
    %v152 = vsel %vm69, %v55, 0
    %v155 = vsel %vm69, %v56, 0
    %v158 = vsel %vm69, %v57, 0
    %v161 = vsel %vm69, %v58, 0
    %v164 = vsel %vm69, %v59, 0
    %166 = vmatprep.subr.mxu0 0.0
    %167 = vmatpush1.msra.mxu0 %v60
    %168 = vmatprep.subr.mxu0 0.0
    %169 = vmatpush1.msra.mxu0 %v61
    %170 = vmatprep.subr.mxu0 0.0
    %171 = vmatpush1.msra.mxu0 %v62
    %172 = vmatprep.subr.mxu0 0.0
    %173 = vmatpush1.msra.mxu0 %v63
    %174 = vmatprep.subr.mxu0 0.0
    %175 = vmatpush1.msra.mxu0 0.0
    %176 = vmatprep.subr.mxu0 0.0
    %177 = vmatpush1.msra.mxu0 0.0
    %178 = vmatprep.subr.mxu0 0.0
    %179 = vmatpush1.msra.mxu0 0.0
    %180 = vmatprep.subr.mxu0 0.0
    %181 = vmatpush1.msra.mxu0 0.0
    %182 = vmatprep.subr.mxu0 0.0
    %183 = vmatpush1.msra.mxu0 0.0
    %184 = vmatprep.subr.mxu0 0.0
    %185 = vmatpush1.msra.mxu0 0.0
    %186 = vmatprep.subr.mxu0 0.0
    %187 = vmatpush1.msra.mxu0 0.0
    %188 = vmatprep.subr.mxu0 0.0
    %189 = vmatpush1.msra.mxu0 0.0
    %190 = vmatprep.subr.mxu0 0.0
    %191 = vmatpush1.msra.mxu0 0.0
    %192 = vmatprep.subr.mxu0 0.0
    %193 = vmatpush1.msra.mxu0 0.0
    %194 = vmatprep.subr.mxu0 0.0
    %195 = vmatpush1.msra.mxu0 0.0
    %196 = vmatprep.subr.mxu0 0.0
    %197 = vmatpush1.msra.mxu0 0.0
    %198 = vmatprep.subr.mxu0 0.0
    %199 = vmatpush1.msra.mxu0 0.0
    %200 = vmatprep.subr.mxu0 0.0
    %201 = vmatpush1.msra.mxu0 0.0
    %202 = vmatprep.subr.mxu0 0.0
    %203 = vmatpush1.msra.mxu0 0.0
    %204 = vmatprep.subr.mxu0 0.0
    %205 = vmatpush1.msra.mxu0 0.0
    %206 = vmatprep.subr.mxu0 0.0
    %207 = vmatpush1.msra.mxu0 0.0
    %208 = vmatprep.subr.mxu0 0.0
    %209 = vmatpush1.msra.mxu0 0.0
    %210 = vmatprep.subr.mxu0 0.0
    %211 = vmatpush1.msra.mxu0 0.0
    %212 = vmatprep.subr.mxu0 0.0
    %213 = vmatpush1.msra.mxu0 0.0
    %214 = vmatprep.subr.mxu0 0.0
    %215 = vmatpush1.msra.mxu0 0.0
    %216 = vmatprep.subr.mxu0 0.0
    %217 = vmatpush1.msra.mxu0 0.0
    %218 = vmatprep.subr.mxu0 0.0
    %219 = vmatpush1.msra.mxu0 0.0
    %220 = vmatprep.subr.mxu0 0.0
    %221 = vmatpush1.msra.mxu0 0.0
    %222 = vmatprep.subr.mxu0 0.0
    %223 = vmatpush1.msra.mxu0 0.0
    %224 = vmatprep.subr.mxu0 0.0
    %225 = vmatpush1.msra.mxu0 0.0
    %226 = vmatprep.subr.mxu0 0.0
    %227 = vmatpush1.msra.mxu0 0.0
    %228 = vmatprep.subr.mxu0 0.0
    %229 = vmatpush1.msra.mxu0 0.0
    %230 = vmatprep.mubr.f32.mxu0 0.0
    %231 = vmatmul.mubr.f32.gmra.mrb[0].mxu0 %v71
    %v232 = vpop.f32.mrb[0].mxu0
    %v233 = vadd.f32 %v68, %v232
    %v234 = vpop.f32.mrb[0].mxu0
    %235 = vmatprep.mubr.f32.mxu0 0.0
    %236 = vmatmul.mubr.f32.gmra.mrb[0].mxu0 %v74
    %v237 = vpop.f32.mrb[0].mxu0
    %v238 = vadd.f32 %v68, %v237
    %v239 = vpop.f32.mrb[0].mxu0
    %240 = vmatprep.mubr.f32.mxu0 0.0
    %241 = vmatmul.mubr.f32.gmra.mrb[0].mxu0 %v77
    %v242 = vpop.f32.mrb[0].mxu0
    %v243 = vadd.f32 %v68, %v242
    %v244 = vpop.f32.mrb[0].mxu0
    %245 = vmatprep.mubr.f32.mxu0 0.0
    %246 = vmatmul.mubr.f32.gmra.mrb[0].mxu0 %v80
    %v247 = vpop.f32.mrb[0].mxu0
    %v248 = vadd.f32 %v68, %v247
    %v249 = vpop.f32.mrb[0].mxu0
    %250 = vmatprep.mubr.f32.mxu0 0.0
    %251 = vmatmul.mubr.f32.gmra.mrb[0].mxu0 %v83
    %v252 = vpop.f32.mrb[0].mxu0
    %v253 = vadd.f32 %v68, %v252
    %v254 = vpop.f32.mrb[0].mxu0
    %255 = vmatprep.mubr.f32.mxu0 0.0
    %256 = vmatmul.mubr.f32.gmra.mrb[0].mxu0 %v86
    %v257 = vpop.f32.mrb[0].mxu0
    %v258 = vadd.f32 %v68, %v257
    %v259 = vpop.f32.mrb[0].mxu0
    %260 = vmatprep.mubr.f32.mxu0 0.0
    %261 = vmatmul.mubr.f32.gmra.mrb[0].mxu0 %v89
    %v262 = vpop.f32.mrb[0].mxu0
    %v263 = vadd.f32 %v68, %v262
    %v264 = vpop.f32.mrb[0].mxu0
    %265 = vmatprep.mubr.f32.mxu0 0.0
    %266 = vmatmul.mubr.f32.gmra.mrb[0].mxu0 %v92
    %v267 = vpop.f32.mrb[0].mxu0
    %v268 = vadd.f32 %v68, %v267
    %v269 = vpop.f32.mrb[0].mxu0
    %270 = vmatprep.mubr.f32.mxu0 0.0
    %271 = vmatmul.mubr.f32.gmra.mrb[0].mxu0 %v95
    %v272 = vpop.f32.mrb[0].mxu0
    %v273 = vadd.f32 %v68, %v272
    %v274 = vpop.f32.mrb[0].mxu0
    %275 = vmatprep.mubr.f32.mxu0 0.0
    %276 = vmatmul.mubr.f32.gmra.mrb[0].mxu0 %v98
    %v277 = vpop.f32.mrb[0].mxu0
    %v278 = vadd.f32 %v68, %v277
    %v279 = vpop.f32.mrb[0].mxu0
    %280 = vmatprep.mubr.f32.mxu0 0.0
    %281 = vmatmul.mubr.f32.gmra.mrb[0].mxu0 %v101
    %v282 = vpop.f32.mrb[0].mxu0
    %v283 = vadd.f32 %v68, %v282
    %v284 = vpop.f32.mrb[0].mxu0
    %285 = vmatprep.mubr.f32.mxu0 0.0
    %286 = vmatmul.mubr.f32.gmra.mrb[0].mxu0 %v104
    %v287 = vpop.f32.mrb[0].mxu0
    %v288 = vadd.f32 %v68, %v287
    %v289 = vpop.f32.mrb[0].mxu0
    %290 = vmatprep.mubr.f32.mxu0 0.0
    %291 = vmatmul.mubr.f32.gmra.mrb[0].mxu0 %v107
    %v292 = vpop.f32.mrb[0].mxu0
    %v293 = vadd.f32 %v68, %v292
    %v294 = vpop.f32.mrb[0].mxu0
    %295 = vmatprep.mubr.f32.mxu0 0.0
    %296 = vmatmul.mubr.f32.gmra.mrb[0].mxu0 %v110
    %v297 = vpop.f32.mrb[0].mxu0
    %v298 = vadd.f32 %v68, %v297
    %v299 = vpop.f32.mrb[0].mxu0
    %300 = vmatprep.mubr.f32.mxu0 0.0
    %301 = vmatmul.mubr.f32.gmra.mrb[0].mxu0 %v113
    %v302 = vpop.f32.mrb[0].mxu0
    %v303 = vadd.f32 %v68, %v302
    %v304 = vpop.f32.mrb[0].mxu0
    %305 = vmatprep.mubr.f32.mxu0 0.0
    %306 = vmatmul.mubr.f32.gmra.mrb[0].mxu0 %v116
    %v307 = vpop.f32.mrb[0].mxu0
    %v308 = vadd.f32 %v68, %v307
    %v309 = vpop.f32.mrb[0].mxu0
    %310 = vmatprep.mubr.f32.mxu0 0.0
    %311 = vmatmul.mubr.f32.gmra.mrb[0].mxu0 %v119
    %v312 = vpop.f32.mrb[0].mxu0
    %v313 = vadd.f32 %v68, %v312
    %v314 = vpop.f32.mrb[0].mxu0
    %315 = vmatprep.mubr.f32.mxu0 0.0
    %316 = vmatmul.mubr.f32.gmra.mrb[0].mxu0 %v122
    %v317 = vpop.f32.mrb[0].mxu0
    %v318 = vadd.f32 %v68, %v317
    %v319 = vpop.f32.mrb[0].mxu0
    %320 = vmatprep.mubr.f32.mxu0 0.0
    %321 = vmatmul.mubr.f32.gmra.mrb[0].mxu0 %v125
    %v322 = vpop.f32.mrb[0].mxu0
    %v323 = vadd.f32 %v68, %v322
    %v324 = vpop.f32.mrb[0].mxu0
    %325 = vmatprep.mubr.f32.mxu0 0.0
    %326 = vmatmul.mubr.f32.gmra.mrb[0].mxu0 %v128
    %v327 = vpop.f32.mrb[0].mxu0
    %v328 = vadd.f32 %v68, %v327
    %v329 = vpop.f32.mrb[0].mxu0
    %330 = vmatprep.mubr.f32.mxu0 0.0
    %331 = vmatmul.mubr.f32.gmra.mrb[0].mxu0 %v131
    %v332 = vpop.f32.mrb[0].mxu0
    %v333 = vadd.f32 %v68, %v332
    %v334 = vpop.f32.mrb[0].mxu0
    %335 = vmatprep.mubr.f32.mxu0 0.0
    %336 = vmatmul.mubr.f32.gmra.mrb[0].mxu0 %v134
    %v337 = vpop.f32.mrb[0].mxu0
    %v338 = vadd.f32 %v68, %v337
    %v339 = vpop.f32.mrb[0].mxu0
    %340 = vmatprep.mubr.f32.mxu0 0.0
    %341 = vmatmul.mubr.f32.gmra.mrb[0].mxu0 %v137
    %v342 = vpop.f32.mrb[0].mxu0
    %v343 = vadd.f32 %v68, %v342
    %v344 = vpop.f32.mrb[0].mxu0
    %345 = vmatprep.mubr.f32.mxu0 0.0
    %346 = vmatmul.mubr.f32.gmra.mrb[0].mxu0 %v140
    %v347 = vpop.f32.mrb[0].mxu0
    %v348 = vadd.f32 %v68, %v347
    %v349 = vpop.f32.mrb[0].mxu0
    %350 = vmatprep.mubr.f32.mxu0 0.0
    %351 = vmatmul.mubr.f32.gmra.mrb[0].mxu0 %v143
    %v352 = vpop.f32.mrb[0].mxu0
    %v353 = vadd.f32 %v68, %v352
    %v354 = vpop.f32.mrb[0].mxu0
    %355 = vmatprep.mubr.f32.mxu0 0.0
    %356 = vmatmul.mubr.f32.gmra.mrb[0].mxu0 %v146
    %v357 = vpop.f32.mrb[0].mxu0
    %v358 = vadd.f32 %v68, %v357
    %v359 = vpop.f32.mrb[0].mxu0
    %360 = vmatprep.mubr.f32.mxu0 0.0
    %361 = vmatmul.mubr.f32.gmra.mrb[0].mxu0 %v149
    %v362 = vpop.f32.mrb[0].mxu0
    %v363 = vadd.f32 %v68, %v362
    %v364 = vpop.f32.mrb[0].mxu0
    %365 = vmatprep.mubr.f32.mxu0 0.0
    %366 = vmatmul.mubr.f32.gmra.mrb[0].mxu0 %v152
    %v367 = vpop.f32.mrb[0].mxu0
    %v368 = vadd.f32 %v68, %v367
    %v369 = vpop.f32.mrb[0].mxu0
    %370 = vmatprep.mubr.f32.mxu0 0.0
    %371 = vmatmul.mubr.f32.gmra.mrb[0].mxu0 %v155
    %v372 = vpop.f32.mrb[0].mxu0
    %v373 = vadd.f32 %v68, %v372
    %v374 = vpop.f32.mrb[0].mxu0
    %375 = vmatprep.mubr.f32.mxu0 0.0
    %376 = vmatmul.mubr.f32.gmra.mrb[0].mxu0 %v158
    %v377 = vpop.f32.mrb[0].mxu0
    %v378 = vadd.f32 %v68, %v377
    %v379 = vpop.f32.mrb[0].mxu0
    %380 = vmatprep.mubr.f32.mxu0 0.0
    %381 = vmatmul.mubr.f32.gmra.mrb[0].mxu0 %v161
    %v382 = vpop.f32.mrb[0].mxu0
    %v383 = vadd.f32 %v68, %v382
    %v384 = vpop.f32.mrb[0].mxu0
    %385 = vmatprep.mubr.f32.mxu0 0.0
    %386 = vmatmul.mubr.f32.gmra.mrb[0].mxu0 %v164
    %v387 = vpop.f32.mrb[0].mxu0
    %v388 = vadd.f32 %v68, %v387
    %v389 = vpop.f32.mrb[0].mxu0
    %390 = vdwg.mxu0
    %391 = vadd.xlane.f32.xlu0 %v233
    %v392 = vpop.xlane.xlu0 %391
    %393 = vadd.xlane.f32.xlu0 %v238
    %v394 = vpop.xlane.xlu0 %393
    %395 = vadd.xlane.f32.xlu0 %v243
    %v396 = vpop.xlane.xlu0 %395
    %397 = vadd.xlane.f32.xlu0 %v248
    %v398 = vpop.xlane.xlu0 %397
    %399 = vadd.xlane.f32.xlu0 %v253
    %v400 = vpop.xlane.xlu0 %399
    %401 = vadd.xlane.f32.xlu0 %v258
    %v402 = vpop.xlane.xlu0 %401
    %403 = vadd.xlane.f32.xlu0 %v263
    %v404 = vpop.xlane.xlu0 %403
    %405 = vadd.xlane.f32.xlu0 %v268
    %v406 = vpop.xlane.xlu0 %405
    %407 = vadd.xlane.f32.xlu0 %v273
    %v408 = vpop.xlane.xlu0 %407
    %409 = vadd.xlane.f32.xlu0 %v278
    %v410 = vpop.xlane.xlu0 %409
    %411 = vadd.xlane.f32.xlu0 %v283
    %v412 = vpop.xlane.xlu0 %411
    %413 = vadd.xlane.f32.xlu0 %v288
    %v414 = vpop.xlane.xlu0 %413
    %415 = vadd.xlane.f32.xlu0 %v293
    %v416 = vpop.xlane.xlu0 %415
    %417 = vadd.xlane.f32.xlu0 %v298
    %v418 = vpop.xlane.xlu0 %417
    %419 = vadd.xlane.f32.xlu0 %v303
    %v420 = vpop.xlane.xlu0 %419
    %421 = vadd.xlane.f32.xlu0 %v308
    %v422 = vpop.xlane.xlu0 %421
    %423 = vadd.xlane.f32.xlu0 %v313
    %v424 = vpop.xlane.xlu0 %423
    %425 = vadd.xlane.f32.xlu0 %v318
    %v426 = vpop.xlane.xlu0 %425
    %427 = vadd.xlane.f32.xlu0 %v323
    %v428 = vpop.xlane.xlu0 %427
    %429 = vadd.xlane.f32.xlu0 %v328
    %v430 = vpop.xlane.xlu0 %429
    %431 = vadd.xlane.f32.xlu0 %v333
    %v432 = vpop.xlane.xlu0 %431
    %433 = vadd.xlane.f32.xlu0 %v338
    %v434 = vpop.xlane.xlu0 %433
    %435 = vadd.xlane.f32.xlu0 %v343
    %v436 = vpop.xlane.xlu0 %435
    %437 = vadd.xlane.f32.xlu0 %v348
    %v438 = vpop.xlane.xlu0 %437
    %439 = vadd.xlane.f32.xlu0 %v353
    %v440 = vpop.xlane.xlu0 %439
    %441 = vadd.xlane.f32.xlu0 %v358
    %v442 = vpop.xlane.xlu0 %441
    %443 = vadd.xlane.f32.xlu0 %v363
    %v444 = vpop.xlane.xlu0 %443
    %445 = vadd.xlane.f32.xlu0 %v368
    %v446 = vpop.xlane.xlu0 %445
    %447 = vadd.xlane.f32.xlu0 %v373
    %v448 = vpop.xlane.xlu0 %447
    %449 = vadd.xlane.f32.xlu0 %v378
    %v450 = vpop.xlane.xlu0 %449
    %451 = vadd.xlane.f32.xlu0 %v383
    %v452 = vpop.xlane.xlu0 %451
    %453 = vadd.xlane.f32.xlu0 %v388
    %v454 = vpop.xlane.xlu0 %453
    %v455 = vmul.f32 %v233, %v233
    %v456 = vmul.f32 %v238, %v238
    %v457 = vmul.f32 %v243, %v243
    %v458 = vmul.f32 %v248, %v248
    %v459 = vmul.f32 %v253, %v253
    %v460 = vmul.f32 %v258, %v258
    %v461 = vmul.f32 %v263, %v263
    %v462 = vmul.f32 %v268, %v268
    %v463 = vmul.f32 %v273, %v273
    %v464 = vmul.f32 %v278, %v278
    %v465 = vmul.f32 %v283, %v283
    %v466 = vmul.f32 %v288, %v288
    %v467 = vmul.f32 %v293, %v293
    %v468 = vmul.f32 %v298, %v298
    %v469 = vmul.f32 %v303, %v303
    %v470 = vmul.f32 %v308, %v308
    %v471 = vmul.f32 %v313, %v313
    %v472 = vmul.f32 %v318, %v318
    %v473 = vmul.f32 %v323, %v323
    %v474 = vmul.f32 %v328, %v328
    %v475 = vmul.f32 %v333, %v333
    %v476 = vmul.f32 %v338, %v338
    %v477 = vmul.f32 %v343, %v343
    %v478 = vmul.f32 %v348, %v348
    %v479 = vmul.f32 %v353, %v353
    %v480 = vmul.f32 %v358, %v358
    %v481 = vmul.f32 %v363, %v363
    %v482 = vmul.f32 %v368, %v368
    %v483 = vmul.f32 %v373, %v373
    %v484 = vmul.f32 %v378, %v378
    %v485 = vmul.f32 %v383, %v383
    %v486 = vmul.f32 %v388, %v388
    %487 = vadd.xlane.f32.xlu0 %v455
    %v488 = vpop.xlane.xlu0 %487
    %489 = vadd.xlane.f32.xlu0 %v456
    %v490 = vpop.xlane.xlu0 %489
    %491 = vadd.xlane.f32.xlu0 %v457
    %v492 = vpop.xlane.xlu0 %491
    %493 = vadd.xlane.f32.xlu0 %v458
    %v494 = vpop.xlane.xlu0 %493
    %495 = vadd.xlane.f32.xlu0 %v459
    %v496 = vpop.xlane.xlu0 %495
    %497 = vadd.xlane.f32.xlu0 %v460
    %v498 = vpop.xlane.xlu0 %497
    %499 = vadd.xlane.f32.xlu0 %v461
    %v500 = vpop.xlane.xlu0 %499
    %501 = vadd.xlane.f32.xlu0 %v462
    %v502 = vpop.xlane.xlu0 %501
    %503 = vadd.xlane.f32.xlu0 %v463
    %v504 = vpop.xlane.xlu0 %503
    %505 = vadd.xlane.f32.xlu0 %v464
    %v506 = vpop.xlane.xlu0 %505
    %507 = vadd.xlane.f32.xlu0 %v465
    %v508 = vpop.xlane.xlu0 %507
    %509 = vadd.xlane.f32.xlu0 %v466
    %v510 = vpop.xlane.xlu0 %509
    %511 = vadd.xlane.f32.xlu0 %v467
    %v512 = vpop.xlane.xlu0 %511
    %513 = vadd.xlane.f32.xlu0 %v468
    %v514 = vpop.xlane.xlu0 %513
    %515 = vadd.xlane.f32.xlu0 %v469
    %v516 = vpop.xlane.xlu0 %515
    %517 = vadd.xlane.f32.xlu0 %v470
    %v518 = vpop.xlane.xlu0 %517
    %519 = vadd.xlane.f32.xlu0 %v471
    %v520 = vpop.xlane.xlu0 %519
    %521 = vadd.xlane.f32.xlu0 %v472
    %v522 = vpop.xlane.xlu0 %521
    %523 = vadd.xlane.f32.xlu0 %v473
    %v524 = vpop.xlane.xlu0 %523
    %525 = vadd.xlane.f32.xlu0 %v474
    %v526 = vpop.xlane.xlu0 %525
    %527 = vadd.xlane.f32.xlu0 %v475
    %v528 = vpop.xlane.xlu0 %527
    %529 = vadd.xlane.f32.xlu0 %v476
    %v530 = vpop.xlane.xlu0 %529
    %531 = vadd.xlane.f32.xlu0 %v477
    %v532 = vpop.xlane.xlu0 %531
    %533 = vadd.xlane.f32.xlu0 %v478
    %v534 = vpop.xlane.xlu0 %533
    %535 = vadd.xlane.f32.xlu0 %v479
    %v536 = vpop.xlane.xlu0 %535
    %537 = vadd.xlane.f32.xlu0 %v480
    %v538 = vpop.xlane.xlu0 %537
    %539 = vadd.xlane.f32.xlu0 %v481
    %v540 = vpop.xlane.xlu0 %539
    %541 = vadd.xlane.f32.xlu0 %v482
    %v542 = vpop.xlane.xlu0 %541
    %543 = vadd.xlane.f32.xlu0 %v483
    %v544 = vpop.xlane.xlu0 %543
    %545 = vadd.xlane.f32.xlu0 %v484
    %v546 = vpop.xlane.xlu0 %545
    %547 = vadd.xlane.f32.xlu0 %v485
    %v548 = vpop.xlane.xlu0 %547
    %549 = vadd.xlane.f32.xlu0 %v486
    %v550 = vpop.xlane.xlu0 %549
    %v551 = vmul.f32 %v392, 0.03125
    %v552 = vmul.f32 %v394, 0.03125
    %v553 = vmul.f32 %v396, 0.03125
    %v554 = vmul.f32 %v398, 0.03125
    %v555 = vmul.f32 %v400, 0.03125
    %v556 = vmul.f32 %v402, 0.03125
    %v557 = vmul.f32 %v404, 0.03125
    %v558 = vmul.f32 %v406, 0.03125
    %v559 = vmul.f32 %v408, 0.03125
    %v560 = vmul.f32 %v410, 0.03125
    %v561 = vmul.f32 %v412, 0.03125
    %v562 = vmul.f32 %v414, 0.03125
    %v563 = vmul.f32 %v416, 0.03125
    %v564 = vmul.f32 %v418, 0.03125
    %v565 = vmul.f32 %v420, 0.03125
    %v566 = vmul.f32 %v422, 0.03125
    %v567 = vmul.f32 %v424, 0.03125
    %v568 = vmul.f32 %v426, 0.03125
    %v569 = vmul.f32 %v428, 0.03125
    %v570 = vmul.f32 %v430, 0.03125
    %v571 = vmul.f32 %v432, 0.03125
    %v572 = vmul.f32 %v434, 0.03125
    %v573 = vmul.f32 %v436, 0.03125
    %v574 = vmul.f32 %v438, 0.03125
    %v575 = vmul.f32 %v440, 0.03125
    %v576 = vmul.f32 %v442, 0.03125
    %v577 = vmul.f32 %v444, 0.03125
    %v578 = vmul.f32 %v446, 0.03125
    %v579 = vmul.f32 %v448, 0.03125
    %v580 = vmul.f32 %v450, 0.03125
    %v581 = vmul.f32 %v452, 0.03125
    %v582 = vmul.f32 %v454, 0.03125
    %v583 = vmul.f32 %v488, 0.03125
    %v584 = vmul.f32 %v490, 0.03125
    %v585 = vmul.f32 %v492, 0.03125
    %v586 = vmul.f32 %v494, 0.03125
    %v587 = vmul.f32 %v496, 0.03125
    %v588 = vmul.f32 %v498, 0.03125
    %v589 = vmul.f32 %v500, 0.03125
    %v590 = vmul.f32 %v502, 0.03125
    %v591 = vmul.f32 %v504, 0.03125
    %v592 = vmul.f32 %v506, 0.03125
    %v593 = vmul.f32 %v508, 0.03125
    %v594 = vmul.f32 %v510, 0.03125
    %v595 = vmul.f32 %v512, 0.03125
    %v596 = vmul.f32 %v514, 0.03125
    %v597 = vmul.f32 %v516, 0.03125
    %v598 = vmul.f32 %v518, 0.03125
    %v599 = vmul.f32 %v520, 0.03125
    %v600 = vmul.f32 %v522, 0.03125
    %v601 = vmul.f32 %v524, 0.03125
    %v602 = vmul.f32 %v526, 0.03125
    %v603 = vmul.f32 %v528, 0.03125
    %v604 = vmul.f32 %v530, 0.03125
    %v605 = vmul.f32 %v532, 0.03125
    %v606 = vmul.f32 %v534, 0.03125
    %v607 = vmul.f32 %v536, 0.03125
    %v608 = vmul.f32 %v538, 0.03125
    %v609 = vmul.f32 %v540, 0.03125
    %v610 = vmul.f32 %v542, 0.03125
    %v611 = vmul.f32 %v544, 0.03125
    %v612 = vmul.f32 %v546, 0.03125
    %v613 = vmul.f32 %v548, 0.03125
    %v614 = vmul.f32 %v550, 0.03125
    %v615 = vmul.f32 %v551, %v551
    %v616 = vmul.f32 %v552, %v552
    %v617 = vmul.f32 %v553, %v553
    %v618 = vmul.f32 %v554, %v554
    %v619 = vmul.f32 %v555, %v555
    %v620 = vmul.f32 %v556, %v556
    %v621 = vmul.f32 %v557, %v557
    %v622 = vmul.f32 %v558, %v558
    %v623 = vmul.f32 %v559, %v559
    %v624 = vmul.f32 %v560, %v560
    %v625 = vmul.f32 %v561, %v561
    %v626 = vmul.f32 %v562, %v562
    %v627 = vmul.f32 %v563, %v563
    %v628 = vmul.f32 %v564, %v564
    %v629 = vmul.f32 %v565, %v565
    %v630 = vmul.f32 %v566, %v566
    %v631 = vmul.f32 %v567, %v567
    %v632 = vmul.f32 %v568, %v568
    %v633 = vmul.f32 %v569, %v569
    %v634 = vmul.f32 %v570, %v570
    %v635 = vmul.f32 %v571, %v571
    %v636 = vmul.f32 %v572, %v572
    %v637 = vmul.f32 %v573, %v573
    %v638 = vmul.f32 %v574, %v574
    %v639 = vmul.f32 %v575, %v575
    %v640 = vmul.f32 %v576, %v576
    %v641 = vmul.f32 %v577, %v577
    %v642 = vmul.f32 %v578, %v578
    %v643 = vmul.f32 %v579, %v579
    %v644 = vmul.f32 %v580, %v580
    %v645 = vmul.f32 %v581, %v581
    %v646 = vmul.f32 %v582, %v582
    %v647 = vsub.f32 %v583, %v615
    %v648 = vsub.f32 %v584, %v616
    %v649 = vsub.f32 %v585, %v617
    %v650 = vsub.f32 %v586, %v618
    %v651 = vsub.f32 %v587, %v619
    %v652 = vsub.f32 %v588, %v620
    %v653 = vsub.f32 %v589, %v621
    %v654 = vsub.f32 %v590, %v622
    %v655 = vsub.f32 %v591, %v623
    %v656 = vsub.f32 %v592, %v624
    %v657 = vsub.f32 %v593, %v625
    %v658 = vsub.f32 %v594, %v626
    %v659 = vsub.f32 %v595, %v627
    %v660 = vsub.f32 %v596, %v628
    %v661 = vsub.f32 %v597, %v629
    %v662 = vsub.f32 %v598, %v630
    %v663 = vsub.f32 %v599, %v631
    %v664 = vsub.f32 %v600, %v632
    %v665 = vsub.f32 %v601, %v633
    %v666 = vsub.f32 %v602, %v634
    %v667 = vsub.f32 %v603, %v635
    %v668 = vsub.f32 %v604, %v636
    %v669 = vsub.f32 %v605, %v637
    %v670 = vsub.f32 %v606, %v638
    %v671 = vsub.f32 %v607, %v639
    %v672 = vsub.f32 %v608, %v640
    %v673 = vsub.f32 %v609, %v641
    %v674 = vsub.f32 %v610, %v642
    %v675 = vsub.f32 %v611, %v643
    %v676 = vsub.f32 %v612, %v644
    %v677 = vsub.f32 %v613, %v645
    %v678 = vsub.f32 %v614, %v646
    %v679 = vsub.f32 %v233, %v551
    %v680 = vsub.f32 %v238, %v552
    %v681 = vsub.f32 %v243, %v553
    %v682 = vsub.f32 %v248, %v554
    %v683 = vsub.f32 %v253, %v555
    %v684 = vsub.f32 %v258, %v556
    %v685 = vsub.f32 %v263, %v557
    %v686 = vsub.f32 %v268, %v558
    %v687 = vsub.f32 %v273, %v559
    %v688 = vsub.f32 %v278, %v560
    %v689 = vsub.f32 %v283, %v561
    %v690 = vsub.f32 %v288, %v562
    %v691 = vsub.f32 %v293, %v563
    %v692 = vsub.f32 %v298, %v564
    %v693 = vsub.f32 %v303, %v565
    %v694 = vsub.f32 %v308, %v566
    %v695 = vsub.f32 %v313, %v567
    %v696 = vsub.f32 %v318, %v568
    %v697 = vsub.f32 %v323, %v569
    %v698 = vsub.f32 %v328, %v570
    %v699 = vsub.f32 %v333, %v571
    %v700 = vsub.f32 %v338, %v572
    %v701 = vsub.f32 %v343, %v573
    %v702 = vsub.f32 %v348, %v574
    %v703 = vsub.f32 %v353, %v575
    %v704 = vsub.f32 %v358, %v576
    %v705 = vsub.f32 %v363, %v577
    %v706 = vsub.f32 %v368, %v578
    %v707 = vsub.f32 %v373, %v579
    %v708 = vsub.f32 %v378, %v580
    %v709 = vsub.f32 %v383, %v581
    %v710 = vsub.f32 %v388, %v582
    %v711 = vadd.f32 %v647, 1e-05
    %v712 = vadd.f32 %v648, 1e-05
    %v713 = vadd.f32 %v649, 1e-05
    %v714 = vadd.f32 %v650, 1e-05
    %v715 = vadd.f32 %v651, 1e-05
    %v716 = vadd.f32 %v652, 1e-05
    %v717 = vadd.f32 %v653, 1e-05
    %v718 = vadd.f32 %v654, 1e-05
    %v719 = vadd.f32 %v655, 1e-05
    %v720 = vadd.f32 %v656, 1e-05
    %v721 = vadd.f32 %v657, 1e-05
    %v722 = vadd.f32 %v658, 1e-05
    %v723 = vadd.f32 %v659, 1e-05
    %v724 = vadd.f32 %v660, 1e-05
    %v725 = vadd.f32 %v661, 1e-05
    %v726 = vadd.f32 %v662, 1e-05
    %v727 = vadd.f32 %v663, 1e-05
    %v728 = vadd.f32 %v664, 1e-05
    %v729 = vadd.f32 %v665, 1e-05
    %v730 = vadd.f32 %v666, 1e-05
    %v731 = vadd.f32 %v667, 1e-05
    %v732 = vadd.f32 %v668, 1e-05
    %v733 = vadd.f32 %v669, 1e-05
    %v734 = vadd.f32 %v670, 1e-05
    %v735 = vadd.f32 %v671, 1e-05
    %v736 = vadd.f32 %v672, 1e-05
    %v737 = vadd.f32 %v673, 1e-05
    %v738 = vadd.f32 %v674, 1e-05
    %v739 = vadd.f32 %v675, 1e-05
    %v740 = vadd.f32 %v676, 1e-05
    %v741 = vadd.f32 %v677, 1e-05
    %v742 = vadd.f32 %v678, 1e-05
    %v743 = vrsqrt.pop %v711
    %v744 = vrsqrt.pop %v712
    %v745 = vrsqrt.pop %v713
    %v746 = vrsqrt.pop %v714
    %v747 = vrsqrt.pop %v715
    %v748 = vrsqrt.pop %v716
    %v749 = vrsqrt.pop %v717
    %v750 = vrsqrt.pop %v718
    %v751 = vrsqrt.pop %v719
    %v752 = vrsqrt.pop %v720
    %v753 = vrsqrt.pop %v721
    %v754 = vrsqrt.pop %v722
    %v755 = vrsqrt.pop %v723
    %v756 = vrsqrt.pop %v724
    %v757 = vrsqrt.pop %v725
    %v758 = vrsqrt.pop %v726
    %v759 = vrsqrt.pop %v727
    %v760 = vrsqrt.pop %v728
    %v761 = vrsqrt.pop %v729
    %v762 = vrsqrt.pop %v730
    %v763 = vrsqrt.pop %v731
    %v764 = vrsqrt.pop %v732
    %v765 = vrsqrt.pop %v733
    %v766 = vrsqrt.pop %v734
    %v767 = vrsqrt.pop %v735
    %v768 = vrsqrt.pop %v736
    %v769 = vrsqrt.pop %v737
    %v770 = vrsqrt.pop %v738
    %v771 = vrsqrt.pop %v739
    %v772 = vrsqrt.pop %v740
    %v773 = vrsqrt.pop %v741
    %v774 = vrsqrt.pop %v742
    %v775 = vmul.f32 %v679, %v743
    %v776 = vmul.f32 %v680, %v744
    %v777 = vmul.f32 %v681, %v745
    %v778 = vmul.f32 %v682, %v746
    %v779 = vmul.f32 %v683, %v747
    %v780 = vmul.f32 %v684, %v748
    %v781 = vmul.f32 %v685, %v749
    %v782 = vmul.f32 %v686, %v750
    %v783 = vmul.f32 %v687, %v751
    %v784 = vmul.f32 %v688, %v752
    %v785 = vmul.f32 %v689, %v753
    %v786 = vmul.f32 %v690, %v754
    %v787 = vmul.f32 %v691, %v755
    %v788 = vmul.f32 %v692, %v756
    %v789 = vmul.f32 %v693, %v757
    %v790 = vmul.f32 %v694, %v758
    %v791 = vmul.f32 %v695, %v759
    %v792 = vmul.f32 %v696, %v760
    %v793 = vmul.f32 %v697, %v761
    %v794 = vmul.f32 %v698, %v762
    %v795 = vmul.f32 %v699, %v763
    %v796 = vmul.f32 %v700, %v764
    %v797 = vmul.f32 %v701, %v765
    %v798 = vmul.f32 %v702, %v766
    %v799 = vmul.f32 %v703, %v767
    %v800 = vmul.f32 %v704, %v768
    %v801 = vmul.f32 %v705, %v769
    %v802 = vmul.f32 %v706, %v770
    %v803 = vmul.f32 %v707, %v771
    %v804 = vmul.f32 %v708, %v772
    %v805 = vmul.f32 %v709, %v773
    %v806 = vmul.f32 %v710, %v774
    %v807 = vld [vmem:[%s2 + $0x1] sm:$0x1]
    %v808 = vlaneseq
    %v809 = vshrl.u32 %v808, 7
    %v810 = vsub.s32 0, %v809
    %v811 = vrot.slane %v807, %v810
    %v812 = vmul.f32 %v775, %v811
    %v813 = vmul.f32 %v776, %v811
    %v814 = vmul.f32 %v777, %v811
    %v815 = vmul.f32 %v778, %v811
    %v816 = vmul.f32 %v779, %v811
    %v817 = vmul.f32 %v780, %v811
    %v818 = vmul.f32 %v781, %v811
    %v819 = vmul.f32 %v782, %v811
    %v820 = vmul.f32 %v783, %v811
    %v821 = vmul.f32 %v784, %v811
    %v822 = vmul.f32 %v785, %v811
    %v823 = vmul.f32 %v786, %v811
    %v824 = vmul.f32 %v787, %v811
    %v825 = vmul.f32 %v788, %v811
    %v826 = vmul.f32 %v789, %v811
    %v827 = vmul.f32 %v790, %v811
    %v828 = vmul.f32 %v791, %v811
    %v829 = vmul.f32 %v792, %v811
    %v830 = vmul.f32 %v793, %v811
    %v831 = vmul.f32 %v794, %v811
    %v832 = vmul.f32 %v795, %v811
    %v833 = vmul.f32 %v796, %v811
    %v834 = vmul.f32 %v797, %v811
    %v835 = vmul.f32 %v798, %v811
    %v836 = vmul.f32 %v799, %v811
    %v837 = vmul.f32 %v800, %v811
    %v838 = vmul.f32 %v801, %v811
    %v839 = vmul.f32 %v802, %v811
    %v840 = vmul.f32 %v803, %v811
    %v841 = vmul.f32 %v804, %v811
    %v842 = vmul.f32 %v805, %v811
    %v843 = vmul.f32 %v806, %v811
    %v844 = vld [vmem:[%s2 + $0x2] sm:$0x1]
    %v845 = vlaneseq
    %v846 = vshrl.u32 %v845, 7
    %v847 = vsub.s32 0, %v846
    %v848 = vrot.slane %v844, %v847
    %v849 = vadd.f32 %v812, %v848
    %v850 = vadd.f32 %v813, %v848
    %v851 = vadd.f32 %v814, %v848
    %v852 = vadd.f32 %v815, %v848
    %v853 = vadd.f32 %v816, %v848
    %v854 = vadd.f32 %v817, %v848
    %v855 = vadd.f32 %v818, %v848
    %v856 = vadd.f32 %v819, %v848
    %v857 = vadd.f32 %v820, %v848
    %v858 = vadd.f32 %v821, %v848
    %v859 = vadd.f32 %v822, %v848
    %v860 = vadd.f32 %v823, %v848
    %v861 = vadd.f32 %v824, %v848
    %v862 = vadd.f32 %v825, %v848
    %v863 = vadd.f32 %v826, %v848
    %v864 = vadd.f32 %v827, %v848
    %v865 = vadd.f32 %v828, %v848
    %v866 = vadd.f32 %v829, %v848
    %v867 = vadd.f32 %v830, %v848
    %v868 = vadd.f32 %v831, %v848
    %v869 = vadd.f32 %v832, %v848
    %v870 = vadd.f32 %v833, %v848
    %v871 = vadd.f32 %v834, %v848
    %v872 = vadd.f32 %v835, %v848
    %v873 = vadd.f32 %v836, %v848
    %v874 = vadd.f32 %v837, %v848
    %v875 = vadd.f32 %v838, %v848
    %v876 = vadd.f32 %v839, %v848
    %v877 = vadd.f32 %v840, %v848
    %v878 = vadd.f32 %v841, %v848
    %v879 = vadd.f32 %v842, %v848
    %v880 = vadd.f32 %v843, %v848
    %v881 = vtanh.pop %v849
    %v882 = vtanh.pop %v850
    %v883 = vtanh.pop %v851
    %v884 = vtanh.pop %v852
    %v885 = vtanh.pop %v853
    %v886 = vtanh.pop %v854
    %v887 = vtanh.pop %v855
    %v888 = vtanh.pop %v856
    %v889 = vtanh.pop %v857
    %v890 = vtanh.pop %v858
    %v891 = vtanh.pop %v859
    %v892 = vtanh.pop %v860
    %v893 = vtanh.pop %v861
    %v894 = vtanh.pop %v862
    %v895 = vtanh.pop %v863
    %v896 = vtanh.pop %v864
    %v897 = vtanh.pop %v865
    %v898 = vtanh.pop %v866
    %v899 = vtanh.pop %v867
    %v900 = vtanh.pop %v868
    %v901 = vtanh.pop %v869
    %v902 = vtanh.pop %v870
    %v903 = vtanh.pop %v871
    %v904 = vtanh.pop %v872
    %v905 = vtanh.pop %v873
    %v906 = vtanh.pop %v874
    %v907 = vtanh.pop %v875
    %v908 = vtanh.pop %v876
    %v909 = vtanh.pop %v877
    %v910 = vtanh.pop %v878
    %v911 = vtanh.pop %v879
    %v912 = vtanh.pop %v880
    %s913 = scalar_lea.vmem [#allocation2], 128
    %v914 = vld [vmem:[%s913] sm:$0xff]
    %v915 = vld [vmem:[%s913 + $0x8] sm:$0xff]
    %v916 = vld [vmem:[%s913 + $0x10] sm:$0xff]
    %v917 = vld [vmem:[%s913 + $0x18] sm:$0xff]
    %v918 = vld [vmem:[%s913 + $0x20] sm:$0xff]
    %v919 = vld [vmem:[%s913 + $0x28] sm:$0xff]
    %v920 = vld [vmem:[%s913 + $0x30] sm:$0xff]
    %v921 = vld [vmem:[%s913 + $0x38] sm:$0xff]
    %v922 = vld [vmem:[%s913 + $0x40] sm:$0xff]
    %v923 = vld [vmem:[%s913 + $0x48] sm:$0xff]
    %v924 = vld [vmem:[%s913 + $0x50] sm:$0xff]
    %v925 = vld [vmem:[%s913 + $0x58] sm:$0xff]
    %v926 = vld [vmem:[%s913 + $0x60] sm:$0xff]
    %v927 = vld [vmem:[%s913 + $0x68] sm:$0xff]
    %v928 = vld [vmem:[%s913 + $0x70] sm:$0xff]
    %v929 = vld [vmem:[%s913 + $0x78] sm:$0xff]
    %v930 = vld [vmem:[%s2 + $0x3] sm:$0x1]
    %v931 = vlaneseq
    %v932 = vshrl.u32 %v931, 7
    %v933 = vsub.s32 0, %v932
    %v934 = vrot.slane %v930, %v933
    %935 = vmatprep.subr.mxu0 0.0
    %936 = vmatpush1.msra.mxu0 %v914
    %937 = vmatprep.subr.mxu0 0.0
    %938 = vmatpush1.msra.mxu0 %v915
    %939 = vmatprep.subr.mxu0 0.0
    %940 = vmatpush1.msra.mxu0 %v916
    %941 = vmatprep.subr.mxu0 0.0
    %942 = vmatpush1.msra.mxu0 %v917
    %943 = vmatprep.subr.mxu0 0.0
    %944 = vmatpush1.msra.mxu0 %v918
    %945 = vmatprep.subr.mxu0 0.0
    %946 = vmatpush1.msra.mxu0 %v919
    %947 = vmatprep.subr.mxu0 0.0
    %948 = vmatpush1.msra.mxu0 %v920
    %949 = vmatprep.subr.mxu0 0.0
    %950 = vmatpush1.msra.mxu0 %v921
    %951 = vmatprep.subr.mxu0 0.0
    %952 = vmatpush1.msra.mxu0 %v922
    %953 = vmatprep.subr.mxu0 0.0
    %954 = vmatpush1.msra.mxu0 %v923
    %955 = vmatprep.subr.mxu0 0.0
    %956 = vmatpush1.msra.mxu0 %v924
    %957 = vmatprep.subr.mxu0 0.0
    %958 = vmatpush1.msra.mxu0 %v925
    %959 = vmatprep.subr.mxu0 0.0
    %960 = vmatpush1.msra.mxu0 %v926
    %961 = vmatprep.subr.mxu0 0.0
    %962 = vmatpush1.msra.mxu0 %v927
    %963 = vmatprep.subr.mxu0 0.0
    %964 = vmatpush1.msra.mxu0 %v928
    %965 = vmatprep.subr.mxu0 0.0
    %966 = vmatpush1.msra.mxu0 %v929
    %967 = vmatprep.subr.mxu0 0.0
    %968 = vmatpush1.msra.mxu0 0.0
    %969 = vmatprep.subr.mxu0 0.0
    %970 = vmatpush1.msra.mxu0 0.0
    %971 = vmatprep.subr.mxu0 0.0
    %972 = vmatpush1.msra.mxu0 0.0
    %973 = vmatprep.subr.mxu0 0.0
    %974 = vmatpush1.msra.mxu0 0.0
    %975 = vmatprep.subr.mxu0 0.0
    %976 = vmatpush1.msra.mxu0 0.0
    %977 = vmatprep.subr.mxu0 0.0
    %978 = vmatpush1.msra.mxu0 0.0
    %979 = vmatprep.subr.mxu0 0.0
    %980 = vmatpush1.msra.mxu0 0.0
    %981 = vmatprep.subr.mxu0 0.0
    %982 = vmatpush1.msra.mxu0 0.0
    %983 = vmatprep.subr.mxu0 0.0
    %984 = vmatpush1.msra.mxu0 0.0
    %985 = vmatprep.subr.mxu0 0.0
    %986 = vmatpush1.msra.mxu0 0.0
    %987 = vmatprep.subr.mxu0 0.0
    %988 = vmatpush1.msra.mxu0 0.0
    %989 = vmatprep.subr.mxu0 0.0
    %990 = vmatpush1.msra.mxu0 0.0
    %991 = vmatprep.subr.mxu0 0.0
    %992 = vmatpush1.msra.mxu0 0.0
    %993 = vmatprep.subr.mxu0 0.0
    %994 = vmatpush1.msra.mxu0 0.0
    %995 = vmatprep.subr.mxu0 0.0
    %996 = vmatpush1.msra.mxu0 0.0
    %997 = vmatprep.subr.mxu0 0.0
    %998 = vmatpush1.msra.mxu0 0.0
    %999 = vmatprep.mubr.f32.mxu0 0.0
    %1000 = vmatmul.mubr.f32.gmra.mrb[0].mxu0 %v881
    %v1001 = vpop.f32.mrb[0].mxu0
    %v1002 = vadd.f32 %v934, %v1001
    %v1003 = vpop.f32.mrb[0].mxu0
    %1004 = vmatprep.mubr.f32.mxu0 0.0
    %1005 = vmatmul.mubr.f32.gmra.mrb[0].mxu0 %v882
    %v1006 = vpop.f32.mrb[0].mxu0
    %v1007 = vadd.f32 %v934, %v1006
    %v1008 = vpop.f32.mrb[0].mxu0
    %1009 = vmatprep.mubr.f32.mxu0 0.0
    %1010 = vmatmul.mubr.f32.gmra.mrb[0].mxu0 %v883
    %v1011 = vpop.f32.mrb[0].mxu0
    %v1012 = vadd.f32 %v934, %v1011
    %v1013 = vpop.f32.mrb[0].mxu0
    %1014 = vmatprep.mubr.f32.mxu0 0.0
    %1015 = vmatmul.mubr.f32.gmra.mrb[0].mxu0 %v884
    %v1016 = vpop.f32.mrb[0].mxu0
    %v1017 = vadd.f32 %v934, %v1016
    %v1018 = vpop.f32.mrb[0].mxu0
    %1019 = vmatprep.mubr.f32.mxu0 0.0
    %1020 = vmatmul.mubr.f32.gmra.mrb[0].mxu0 %v885
    %v1021 = vpop.f32.mrb[0].mxu0
    %v1022 = vadd.f32 %v934, %v1021
    %v1023 = vpop.f32.mrb[0].mxu0
    %1024 = vmatprep.mubr.f32.mxu0 0.0
    %1025 = vmatmul.mubr.f32.gmra.mrb[0].mxu0 %v886
    %v1026 = vpop.f32.mrb[0].mxu0
    %v1027 = vadd.f32 %v934, %v1026
    %v1028 = vpop.f32.mrb[0].mxu0
    %1029 = vmatprep.mubr.f32.mxu0 0.0
    %1030 = vmatmul.mubr.f32.gmra.mrb[0].mxu0 %v887
    %v1031 = vpop.f32.mrb[0].mxu0
    %v1032 = vadd.f32 %v934, %v1031
    %v1033 = vpop.f32.mrb[0].mxu0
    %1034 = vmatprep.mubr.f32.mxu0 0.0
    %1035 = vmatmul.mubr.f32.gmra.mrb[0].mxu0 %v888
    %v1036 = vpop.f32.mrb[0].mxu0
    %v1037 = vadd.f32 %v934, %v1036
    %v1038 = vpop.f32.mrb[0].mxu0
    %1039 = vmatprep.mubr.f32.mxu0 0.0
    %1040 = vmatmul.mubr.f32.gmra.mrb[0].mxu0 %v889
    %v1041 = vpop.f32.mrb[0].mxu0
    %v1042 = vadd.f32 %v934, %v1041
    %v1043 = vpop.f32.mrb[0].mxu0
    %1044 = vmatprep.mubr.f32.mxu0 0.0
    %1045 = vmatmul.mubr.f32.gmra.mrb[0].mxu0 %v890
    %v1046 = vpop.f32.mrb[0].mxu0
    %v1047 = vadd.f32 %v934, %v1046
    %v1048 = vpop.f32.mrb[0].mxu0
    %1049 = vmatprep.mubr.f32.mxu0 0.0
    %1050 = vmatmul.mubr.f32.gmra.mrb[0].mxu0 %v891
    %v1051 = vpop.f32.mrb[0].mxu0
    %v1052 = vadd.f32 %v934, %v1051
    %v1053 = vpop.f32.mrb[0].mxu0
    %1054 = vmatprep.mubr.f32.mxu0 0.0
    %1055 = vmatmul.mubr.f32.gmra.mrb[0].mxu0 %v892
    %v1056 = vpop.f32.mrb[0].mxu0
    %v1057 = vadd.f32 %v934, %v1056
    %v1058 = vpop.f32.mrb[0].mxu0
    %1059 = vmatprep.mubr.f32.mxu0 0.0
    %1060 = vmatmul.mubr.f32.gmra.mrb[0].mxu0 %v893
    %v1061 = vpop.f32.mrb[0].mxu0
    %v1062 = vadd.f32 %v934, %v1061
    %v1063 = vpop.f32.mrb[0].mxu0
    %1064 = vmatprep.mubr.f32.mxu0 0.0
    %1065 = vmatmul.mubr.f32.gmra.mrb[0].mxu0 %v894
    %v1066 = vpop.f32.mrb[0].mxu0
    %v1067 = vadd.f32 %v934, %v1066
    %v1068 = vpop.f32.mrb[0].mxu0
    %1069 = vmatprep.mubr.f32.mxu0 0.0
    %1070 = vmatmul.mubr.f32.gmra.mrb[0].mxu0 %v895
    %v1071 = vpop.f32.mrb[0].mxu0
    %v1072 = vadd.f32 %v934, %v1071
    %v1073 = vpop.f32.mrb[0].mxu0
    %1074 = vmatprep.mubr.f32.mxu0 0.0
    %1075 = vmatmul.mubr.f32.gmra.mrb[0].mxu0 %v896
    %v1076 = vpop.f32.mrb[0].mxu0
    %v1077 = vadd.f32 %v934, %v1076
    %v1078 = vpop.f32.mrb[0].mxu0
    %1079 = vmatprep.mubr.f32.mxu0 0.0
    %1080 = vmatmul.mubr.f32.gmra.mrb[0].mxu0 %v897
    %v1081 = vpop.f32.mrb[0].mxu0
    %v1082 = vadd.f32 %v934, %v1081
    %v1083 = vpop.f32.mrb[0].mxu0
    %1084 = vmatprep.mubr.f32.mxu0 0.0
    %1085 = vmatmul.mubr.f32.gmra.mrb[0].mxu0 %v898
    %v1086 = vpop.f32.mrb[0].mxu0
    %v1087 = vadd.f32 %v934, %v1086
    %v1088 = vpop.f32.mrb[0].mxu0
    %1089 = vmatprep.mubr.f32.mxu0 0.0
    %1090 = vmatmul.mubr.f32.gmra.mrb[0].mxu0 %v899
    %v1091 = vpop.f32.mrb[0].mxu0
    %v1092 = vadd.f32 %v934, %v1091
    %v1093 = vpop.f32.mrb[0].mxu0
    %1094 = vmatprep.mubr.f32.mxu0 0.0
    %1095 = vmatmul.mubr.f32.gmra.mrb[0].mxu0 %v900
    %v1096 = vpop.f32.mrb[0].mxu0
    %v1097 = vadd.f32 %v934, %v1096
    %v1098 = vpop.f32.mrb[0].mxu0
    %1099 = vmatprep.mubr.f32.mxu0 0.0
    %1100 = vmatmul.mubr.f32.gmra.mrb[0].mxu0 %v901
    %v1101 = vpop.f32.mrb[0].mxu0
    %v1102 = vadd.f32 %v934, %v1101
    %v1103 = vpop.f32.mrb[0].mxu0
    %1104 = vmatprep.mubr.f32.mxu0 0.0
    %1105 = vmatmul.mubr.f32.gmra.mrb[0].mxu0 %v902
    %v1106 = vpop.f32.mrb[0].mxu0
    %v1107 = vadd.f32 %v934, %v1106
    %v1108 = vpop.f32.mrb[0].mxu0
    %1109 = vmatprep.mubr.f32.mxu0 0.0
    %1110 = vmatmul.mubr.f32.gmra.mrb[0].mxu0 %v903
    %v1111 = vpop.f32.mrb[0].mxu0
    %v1112 = vadd.f32 %v934, %v1111
    %v1113 = vpop.f32.mrb[0].mxu0
    %1114 = vmatprep.mubr.f32.mxu0 0.0
    %1115 = vmatmul.mubr.f32.gmra.mrb[0].mxu0 %v904
    %v1116 = vpop.f32.mrb[0].mxu0
    %v1117 = vadd.f32 %v934, %v1116
    %v1118 = vpop.f32.mrb[0].mxu0
    %1119 = vmatprep.mubr.f32.mxu0 0.0
    %1120 = vmatmul.mubr.f32.gmra.mrb[0].mxu0 %v905
    %v1121 = vpop.f32.mrb[0].mxu0
    %v1122 = vadd.f32 %v934, %v1121
    %v1123 = vpop.f32.mrb[0].mxu0
    %1124 = vmatprep.mubr.f32.mxu0 0.0
    %1125 = vmatmul.mubr.f32.gmra.mrb[0].mxu0 %v906
    %v1126 = vpop.f32.mrb[0].mxu0
    %v1127 = vadd.f32 %v934, %v1126
    %v1128 = vpop.f32.mrb[0].mxu0
    %1129 = vmatprep.mubr.f32.mxu0 0.0
    %1130 = vmatmul.mubr.f32.gmra.mrb[0].mxu0 %v907
    %v1131 = vpop.f32.mrb[0].mxu0
    %v1132 = vadd.f32 %v934, %v1131
    %v1133 = vpop.f32.mrb[0].mxu0
    %1134 = vmatprep.mubr.f32.mxu0 0.0
    %1135 = vmatmul.mubr.f32.gmra.mrb[0].mxu0 %v908
    %v1136 = vpop.f32.mrb[0].mxu0
    %v1137 = vadd.f32 %v934, %v1136
    %v1138 = vpop.f32.mrb[0].mxu0
    %1139 = vmatprep.mubr.f32.mxu0 0.0
    %1140 = vmatmul.mubr.f32.gmra.mrb[0].mxu0 %v909
    %v1141 = vpop.f32.mrb[0].mxu0
    %v1142 = vadd.f32 %v934, %v1141
    %v1143 = vpop.f32.mrb[0].mxu0
    %1144 = vmatprep.mubr.f32.mxu0 0.0
    %1145 = vmatmul.mubr.f32.gmra.mrb[0].mxu0 %v910
    %v1146 = vpop.f32.mrb[0].mxu0
    %v1147 = vadd.f32 %v934, %v1146
    %v1148 = vpop.f32.mrb[0].mxu0
    %1149 = vmatprep.mubr.f32.mxu0 0.0
    %1150 = vmatmul.mubr.f32.gmra.mrb[0].mxu0 %v911
    %v1151 = vpop.f32.mrb[0].mxu0
    %v1152 = vadd.f32 %v934, %v1151
    %v1153 = vpop.f32.mrb[0].mxu0
    %1154 = vmatprep.mubr.f32.mxu0 0.0
    %1155 = vmatmul.mubr.f32.gmra.mrb[0].mxu0 %v912
    %v1156 = vpop.f32.mrb[0].mxu0
    %v1157 = vadd.f32 %v934, %v1156
    %v1158 = vpop.f32.mrb[0].mxu0
    %1159 = vdwg.mxu0
    %v1160 = vmax.f32 %v1002, 0.0
    %v1161 = vmax.f32 %v1007, 0.0
    %v1162 = vmax.f32 %v1012, 0.0
    %v1163 = vmax.f32 %v1017, 0.0
    %v1164 = vmax.f32 %v1022, 0.0
    %v1165 = vmax.f32 %v1027, 0.0
    %v1166 = vmax.f32 %v1032, 0.0
    %v1167 = vmax.f32 %v1037, 0.0
    %v1168 = vmax.f32 %v1042, 0.0
    %v1169 = vmax.f32 %v1047, 0.0
    %v1170 = vmax.f32 %v1052, 0.0
    %v1171 = vmax.f32 %v1057, 0.0
    %v1172 = vmax.f32 %v1062, 0.0
    %v1173 = vmax.f32 %v1067, 0.0
    %v1174 = vmax.f32 %v1072, 0.0
    %v1175 = vmax.f32 %v1077, 0.0
    %v1176 = vmax.f32 %v1082, 0.0
    %v1177 = vmax.f32 %v1087, 0.0
    %v1178 = vmax.f32 %v1092, 0.0
    %v1179 = vmax.f32 %v1097, 0.0
    %v1180 = vmax.f32 %v1102, 0.0
    %v1181 = vmax.f32 %v1107, 0.0
    %v1182 = vmax.f32 %v1112, 0.0
    %v1183 = vmax.f32 %v1117, 0.0
    %v1184 = vmax.f32 %v1122, 0.0
    %v1185 = vmax.f32 %v1127, 0.0
    %v1186 = vmax.f32 %v1132, 0.0
    %v1187 = vmax.f32 %v1137, 0.0
    %v1188 = vmax.f32 %v1142, 0.0
    %v1189 = vmax.f32 %v1147, 0.0
    %v1190 = vmax.f32 %v1152, 0.0
    %v1191 = vmax.f32 %v1157, 0.0
    %s1192 = scalar_lea.vmem [#allocation2], 256
    %v1193 = vld [vmem:[%s1192] sm:$0xff]
    %v1194 = vld [vmem:[%s1192 + $0x8] sm:$0xff]
    %v1195 = vld [vmem:[%s1192 + $0x10] sm:$0xff]
    %v1196 = vld [vmem:[%s1192 + $0x18] sm:$0xff]
    %v1197 = vld [vmem:[%s1192 + $0x20] sm:$0xff]
    %v1198 = vld [vmem:[%s1192 + $0x28] sm:$0xff]
    %v1199 = vld [vmem:[%s1192 + $0x30] sm:$0xff]
    %v1200 = vld [vmem:[%s1192 + $0x38] sm:$0xff]
    %v1201 = vld [vmem:[%s1192 + $0x40] sm:$0xff]
    %v1202 = vld [vmem:[%s1192 + $0x48] sm:$0xff]
    %v1203 = vld [vmem:[%s1192 + $0x50] sm:$0xff]
    %v1204 = vld [vmem:[%s1192 + $0x58] sm:$0xff]
    %v1205 = vld [vmem:[%s1192 + $0x60] sm:$0xff]
    %v1206 = vld [vmem:[%s1192 + $0x68] sm:$0xff]
    %v1207 = vld [vmem:[%s1192 + $0x70] sm:$0xff]
    %v1208 = vld [vmem:[%s1192 + $0x78] sm:$0xff]
    %v1209 = vld [vmem:[%s2 + $0x4] sm:$0x1]
    %v1210 = vlaneseq
    %v1211 = vshrl.u32 %v1210, 7
    %v1212 = vsub.s32 0, %v1211
    %v1213 = vrot.slane %v1209, %v1212
    %1214 = vmatprep.subr.mxu0 0.0
    %1215 = vmatpush1.msra.mxu0 %v1193
    %1216 = vmatprep.subr.mxu0 0.0
    %1217 = vmatpush1.msra.mxu0 %v1194
    %1218 = vmatprep.subr.mxu0 0.0
    %1219 = vmatpush1.msra.mxu0 %v1195
    %1220 = vmatprep.subr.mxu0 0.0
    %1221 = vmatpush1.msra.mxu0 %v1196
    %1222 = vmatprep.subr.mxu0 0.0
    %1223 = vmatpush1.msra.mxu0 %v1197
    %1224 = vmatprep.subr.mxu0 0.0
    %1225 = vmatpush1.msra.mxu0 %v1198
    %1226 = vmatprep.subr.mxu0 0.0
    %1227 = vmatpush1.msra.mxu0 %v1199
    %1228 = vmatprep.subr.mxu0 0.0
    %1229 = vmatpush1.msra.mxu0 %v1200
    %1230 = vmatprep.subr.mxu0 0.0
    %1231 = vmatpush1.msra.mxu0 %v1201
    %1232 = vmatprep.subr.mxu0 0.0
    %1233 = vmatpush1.msra.mxu0 %v1202
    %1234 = vmatprep.subr.mxu0 0.0
    %1235 = vmatpush1.msra.mxu0 %v1203
    %1236 = vmatprep.subr.mxu0 0.0
    %1237 = vmatpush1.msra.mxu0 %v1204
    %1238 = vmatprep.subr.mxu0 0.0
    %1239 = vmatpush1.msra.mxu0 %v1205
    %1240 = vmatprep.subr.mxu0 0.0
    %1241 = vmatpush1.msra.mxu0 %v1206
    %1242 = vmatprep.subr.mxu0 0.0
    %1243 = vmatpush1.msra.mxu0 %v1207
    %1244 = vmatprep.subr.mxu0 0.0
    %1245 = vmatpush1.msra.mxu0 %v1208
    %1246 = vmatprep.subr.mxu0 0.0
    %1247 = vmatpush1.msra.mxu0 0.0
    %1248 = vmatprep.subr.mxu0 0.0
    %1249 = vmatpush1.msra.mxu0 0.0
    %1250 = vmatprep.subr.mxu0 0.0
    %1251 = vmatpush1.msra.mxu0 0.0
    %1252 = vmatprep.subr.mxu0 0.0
    %1253 = vmatpush1.msra.mxu0 0.0
    %1254 = vmatprep.subr.mxu0 0.0
    %1255 = vmatpush1.msra.mxu0 0.0
    %1256 = vmatprep.subr.mxu0 0.0
    %1257 = vmatpush1.msra.mxu0 0.0
    %1258 = vmatprep.subr.mxu0 0.0
    %1259 = vmatpush1.msra.mxu0 0.0
    %1260 = vmatprep.subr.mxu0 0.0
    %1261 = vmatpush1.msra.mxu0 0.0
    %1262 = vmatprep.subr.mxu0 0.0
    %1263 = vmatpush1.msra.mxu0 0.0
    %1264 = vmatprep.subr.mxu0 0.0
    %1265 = vmatpush1.msra.mxu0 0.0
    %1266 = vmatprep.subr.mxu0 0.0
    %1267 = vmatpush1.msra.mxu0 0.0
    %1268 = vmatprep.subr.mxu0 0.0
    %1269 = vmatpush1.msra.mxu0 0.0
    %1270 = vmatprep.subr.mxu0 0.0
    %1271 = vmatpush1.msra.mxu0 0.0
    %1272 = vmatprep.subr.mxu0 0.0
    %1273 = vmatpush1.msra.mxu0 0.0
    %1274 = vmatprep.subr.mxu0 0.0
    %1275 = vmatpush1.msra.mxu0 0.0
    %1276 = vmatprep.subr.mxu0 0.0
    %1277 = vmatpush1.msra.mxu0 0.0
    %1278 = vmatprep.mubr.f32.mxu0 0.0
    %1279 = vmatmul.mubr.f32.gmra.mrb[0].mxu0 %v1160
    %v1280 = vpop.f32.mrb[0].mxu0
    %v1281 = vadd.f32 %v1213, %v1280
    %v1282 = vpop.f32.mrb[0].mxu0
    %1283 = vmatprep.mubr.f32.mxu0 0.0
    %1284 = vmatmul.mubr.f32.gmra.mrb[0].mxu0 %v1161
    %v1285 = vpop.f32.mrb[0].mxu0
    %v1286 = vadd.f32 %v1213, %v1285
    %v1287 = vpop.f32.mrb[0].mxu0
    %1288 = vmatprep.mubr.f32.mxu0 0.0
    %1289 = vmatmul.mubr.f32.gmra.mrb[0].mxu0 %v1162
    %v1290 = vpop.f32.mrb[0].mxu0
    %v1291 = vadd.f32 %v1213, %v1290
    %v1292 = vpop.f32.mrb[0].mxu0
    %1293 = vmatprep.mubr.f32.mxu0 0.0
    %1294 = vmatmul.mubr.f32.gmra.mrb[0].mxu0 %v1163
    %v1295 = vpop.f32.mrb[0].mxu0
    %v1296 = vadd.f32 %v1213, %v1295
    %v1297 = vpop.f32.mrb[0].mxu0
    %1298 = vmatprep.mubr.f32.mxu0 0.0
    %1299 = vmatmul.mubr.f32.gmra.mrb[0].mxu0 %v1164
    %v1300 = vpop.f32.mrb[0].mxu0
    %v1301 = vadd.f32 %v1213, %v1300
    %v1302 = vpop.f32.mrb[0].mxu0
    %1303 = vmatprep.mubr.f32.mxu0 0.0
    %1304 = vmatmul.mubr.f32.gmra.mrb[0].mxu0 %v1165
    %v1305 = vpop.f32.mrb[0].mxu0
    %v1306 = vadd.f32 %v1213, %v1305
    %v1307 = vpop.f32.mrb[0].mxu0
    %1308 = vmatprep.mubr.f32.mxu0 0.0
    %1309 = vmatmul.mubr.f32.gmra.mrb[0].mxu0 %v1166
    %v1310 = vpop.f32.mrb[0].mxu0
    %v1311 = vadd.f32 %v1213, %v1310
    %v1312 = vpop.f32.mrb[0].mxu0
    %1313 = vmatprep.mubr.f32.mxu0 0.0
    %1314 = vmatmul.mubr.f32.gmra.mrb[0].mxu0 %v1167
    %v1315 = vpop.f32.mrb[0].mxu0
    %v1316 = vadd.f32 %v1213, %v1315
    %v1317 = vpop.f32.mrb[0].mxu0
    %1318 = vmatprep.mubr.f32.mxu0 0.0
    %1319 = vmatmul.mubr.f32.gmra.mrb[0].mxu0 %v1168
    %v1320 = vpop.f32.mrb[0].mxu0
    %v1321 = vadd.f32 %v1213, %v1320
    %v1322 = vpop.f32.mrb[0].mxu0
    %1323 = vmatprep.mubr.f32.mxu0 0.0
    %1324 = vmatmul.mubr.f32.gmra.mrb[0].mxu0 %v1169
    %v1325 = vpop.f32.mrb[0].mxu0
    %v1326 = vadd.f32 %v1213, %v1325
    %v1327 = vpop.f32.mrb[0].mxu0
    %1328 = vmatprep.mubr.f32.mxu0 0.0
    %1329 = vmatmul.mubr.f32.gmra.mrb[0].mxu0 %v1170
    %v1330 = vpop.f32.mrb[0].mxu0
    %v1331 = vadd.f32 %v1213, %v1330
    %v1332 = vpop.f32.mrb[0].mxu0
    %1333 = vmatprep.mubr.f32.mxu0 0.0
    %1334 = vmatmul.mubr.f32.gmra.mrb[0].mxu0 %v1171
    %v1335 = vpop.f32.mrb[0].mxu0
    %v1336 = vadd.f32 %v1213, %v1335
    %v1337 = vpop.f32.mrb[0].mxu0
    %1338 = vmatprep.mubr.f32.mxu0 0.0
    %1339 = vmatmul.mubr.f32.gmra.mrb[0].mxu0 %v1172
    %v1340 = vpop.f32.mrb[0].mxu0
    %v1341 = vadd.f32 %v1213, %v1340
    %v1342 = vpop.f32.mrb[0].mxu0
    %1343 = vmatprep.mubr.f32.mxu0 0.0
    %1344 = vmatmul.mubr.f32.gmra.mrb[0].mxu0 %v1173
    %v1345 = vpop.f32.mrb[0].mxu0
    %v1346 = vadd.f32 %v1213, %v1345
    %v1347 = vpop.f32.mrb[0].mxu0
    %1348 = vmatprep.mubr.f32.mxu0 0.0
    %1349 = vmatmul.mubr.f32.gmra.mrb[0].mxu0 %v1174
    %v1350 = vpop.f32.mrb[0].mxu0
    %v1351 = vadd.f32 %v1213, %v1350
    %v1352 = vpop.f32.mrb[0].mxu0
    %1353 = vmatprep.mubr.f32.mxu0 0.0
    %1354 = vmatmul.mubr.f32.gmra.mrb[0].mxu0 %v1175
    %v1355 = vpop.f32.mrb[0].mxu0
    %v1356 = vadd.f32 %v1213, %v1355
    %v1357 = vpop.f32.mrb[0].mxu0
    %1358 = vmatprep.mubr.f32.mxu0 0.0
    %1359 = vmatmul.mubr.f32.gmra.mrb[0].mxu0 %v1176
    %v1360 = vpop.f32.mrb[0].mxu0
    %v1361 = vadd.f32 %v1213, %v1360
    %v1362 = vpop.f32.mrb[0].mxu0
    %1363 = vmatprep.mubr.f32.mxu0 0.0
    %1364 = vmatmul.mubr.f32.gmra.mrb[0].mxu0 %v1177
    %v1365 = vpop.f32.mrb[0].mxu0
    %v1366 = vadd.f32 %v1213, %v1365
    %v1367 = vpop.f32.mrb[0].mxu0
    %1368 = vmatprep.mubr.f32.mxu0 0.0
    %1369 = vmatmul.mubr.f32.gmra.mrb[0].mxu0 %v1178
    %v1370 = vpop.f32.mrb[0].mxu0
    %v1371 = vadd.f32 %v1213, %v1370
    %v1372 = vpop.f32.mrb[0].mxu0
    %1373 = vmatprep.mubr.f32.mxu0 0.0
    %1374 = vmatmul.mubr.f32.gmra.mrb[0].mxu0 %v1179
    %v1375 = vpop.f32.mrb[0].mxu0
    %v1376 = vadd.f32 %v1213, %v1375
    %v1377 = vpop.f32.mrb[0].mxu0
    %1378 = vmatprep.mubr.f32.mxu0 0.0
    %1379 = vmatmul.mubr.f32.gmra.mrb[0].mxu0 %v1180
    %v1380 = vpop.f32.mrb[0].mxu0
    %v1381 = vadd.f32 %v1213, %v1380
    %v1382 = vpop.f32.mrb[0].mxu0
    %1383 = vmatprep.mubr.f32.mxu0 0.0
    %1384 = vmatmul.mubr.f32.gmra.mrb[0].mxu0 %v1181
    %v1385 = vpop.f32.mrb[0].mxu0
    %v1386 = vadd.f32 %v1213, %v1385
    %v1387 = vpop.f32.mrb[0].mxu0
    %1388 = vmatprep.mubr.f32.mxu0 0.0
    %1389 = vmatmul.mubr.f32.gmra.mrb[0].mxu0 %v1182
    %v1390 = vpop.f32.mrb[0].mxu0
    %v1391 = vadd.f32 %v1213, %v1390
    %v1392 = vpop.f32.mrb[0].mxu0
    %1393 = vmatprep.mubr.f32.mxu0 0.0
    %1394 = vmatmul.mubr.f32.gmra.mrb[0].mxu0 %v1183
    %v1395 = vpop.f32.mrb[0].mxu0
    %v1396 = vadd.f32 %v1213, %v1395
    %v1397 = vpop.f32.mrb[0].mxu0
    %1398 = vmatprep.mubr.f32.mxu0 0.0
    %1399 = vmatmul.mubr.f32.gmra.mrb[0].mxu0 %v1184
    %v1400 = vpop.f32.mrb[0].mxu0
    %v1401 = vadd.f32 %v1213, %v1400
    %v1402 = vpop.f32.mrb[0].mxu0
    %1403 = vmatprep.mubr.f32.mxu0 0.0
    %1404 = vmatmul.mubr.f32.gmra.mrb[0].mxu0 %v1185
    %v1405 = vpop.f32.mrb[0].mxu0
    %v1406 = vadd.f32 %v1213, %v1405
    %v1407 = vpop.f32.mrb[0].mxu0
    %1408 = vmatprep.mubr.f32.mxu0 0.0
    %1409 = vmatmul.mubr.f32.gmra.mrb[0].mxu0 %v1186
    %v1410 = vpop.f32.mrb[0].mxu0
    %v1411 = vadd.f32 %v1213, %v1410
    %v1412 = vpop.f32.mrb[0].mxu0
    %1413 = vmatprep.mubr.f32.mxu0 0.0
    %1414 = vmatmul.mubr.f32.gmra.mrb[0].mxu0 %v1187
    %v1415 = vpop.f32.mrb[0].mxu0
    %v1416 = vadd.f32 %v1213, %v1415
    %v1417 = vpop.f32.mrb[0].mxu0
    %1418 = vmatprep.mubr.f32.mxu0 0.0
    %1419 = vmatmul.mubr.f32.gmra.mrb[0].mxu0 %v1188
    %v1420 = vpop.f32.mrb[0].mxu0
    %v1421 = vadd.f32 %v1213, %v1420
    %v1422 = vpop.f32.mrb[0].mxu0
    %1423 = vmatprep.mubr.f32.mxu0 0.0
    %1424 = vmatmul.mubr.f32.gmra.mrb[0].mxu0 %v1189
    %v1425 = vpop.f32.mrb[0].mxu0
    %v1426 = vadd.f32 %v1213, %v1425
    %v1427 = vpop.f32.mrb[0].mxu0
    %1428 = vmatprep.mubr.f32.mxu0 0.0
    %1429 = vmatmul.mubr.f32.gmra.mrb[0].mxu0 %v1190
    %v1430 = vpop.f32.mrb[0].mxu0
    %v1431 = vadd.f32 %v1213, %v1430
    %v1432 = vpop.f32.mrb[0].mxu0
    %1433 = vmatprep.mubr.f32.mxu0 0.0
    %1434 = vmatmul.mubr.f32.gmra.mrb[0].mxu0 %v1191
    %v1435 = vpop.f32.mrb[0].mxu0
    %v1436 = vadd.f32 %v1213, %v1435
    %v1437 = vpop.f32.mrb[0].mxu0
    %1438 = vdwg.mxu0
    %v1439 = vmax.f32 %v1281, 0.0
    %v1440 = vmax.f32 %v1286, 0.0
    %v1441 = vmax.f32 %v1291, 0.0
    %v1442 = vmax.f32 %v1296, 0.0
    %v1443 = vmax.f32 %v1301, 0.0
    %v1444 = vmax.f32 %v1306, 0.0
    %v1445 = vmax.f32 %v1311, 0.0
    %v1446 = vmax.f32 %v1316, 0.0
    %v1447 = vmax.f32 %v1321, 0.0
    %v1448 = vmax.f32 %v1326, 0.0
    %v1449 = vmax.f32 %v1331, 0.0
    %v1450 = vmax.f32 %v1336, 0.0
    %v1451 = vmax.f32 %v1341, 0.0
    %v1452 = vmax.f32 %v1346, 0.0
    %v1453 = vmax.f32 %v1351, 0.0
    %v1454 = vmax.f32 %v1356, 0.0
    %v1455 = vmax.f32 %v1361, 0.0
    %v1456 = vmax.f32 %v1366, 0.0
    %v1457 = vmax.f32 %v1371, 0.0
    %v1458 = vmax.f32 %v1376, 0.0
    %v1459 = vmax.f32 %v1381, 0.0
    %v1460 = vmax.f32 %v1386, 0.0
    %v1461 = vmax.f32 %v1391, 0.0
    %v1462 = vmax.f32 %v1396, 0.0
    %v1463 = vmax.f32 %v1401, 0.0
    %v1464 = vmax.f32 %v1406, 0.0
    %v1465 = vmax.f32 %v1411, 0.0
    %v1466 = vmax.f32 %v1416, 0.0
    %v1467 = vmax.f32 %v1421, 0.0
    %v1468 = vmax.f32 %v1426, 0.0
    %v1469 = vmax.f32 %v1431, 0.0
    %v1470 = vmax.f32 %v1436, 0.0
    %s1471 = scalar_lea.vmem [#allocation2], 384
    %v1472 = vld [vmem:[%s1471] sm:$0xff]
    %v1473 = vld [vmem:[%s1471 + $0x8] sm:$0xff]
    %v1474 = vld [vmem:[%s1471 + $0x10] sm:$0xff]
    %v1475 = vld [vmem:[%s1471 + $0x18] sm:$0xff]
    %v1476 = vld [vmem:[%s1471 + $0x20] sm:$0xff]
    %v1477 = vld [vmem:[%s1471 + $0x28] sm:$0xff]
    %v1478 = vld [vmem:[%s1471 + $0x30] sm:$0xff]
    %v1479 = vld [vmem:[%s1471 + $0x38] sm:$0xff]
    %v1480 = vld [vmem:[%s1471 + $0x40] sm:$0xff]
    %v1481 = vld [vmem:[%s1471 + $0x48] sm:$0xff]
    %v1482 = vld [vmem:[%s1471 + $0x50] sm:$0xff]
    %v1483 = vld [vmem:[%s1471 + $0x58] sm:$0xff]
    %v1484 = vld [vmem:[%s1471 + $0x60] sm:$0xff]
    %v1485 = vld [vmem:[%s1471 + $0x68] sm:$0xff]
    %v1486 = vld [vmem:[%s1471 + $0x70] sm:$0xff]
    %v1487 = vld [vmem:[%s1471 + $0x78] sm:$0xff]
    %v1488 = vld [vmem:[%s2 + $0x5] sm:$0x1]
    %v1489 = vlaneseq
    %v1490 = vshrl.u32 %v1489, 7
    %v1491 = vsub.s32 0, %v1490
    %v1492 = vrot.slane %v1488, %v1491
    %1493 = vmatprep.subr.mxu0 0.0
    %1494 = vmatpush1.msra.mxu0 %v1472
    %1495 = vmatprep.subr.mxu0 0.0
    %1496 = vmatpush1.msra.mxu0 %v1473
    %1497 = vmatprep.subr.mxu0 0.0
    %1498 = vmatpush1.msra.mxu0 %v1474
    %1499 = vmatprep.subr.mxu0 0.0
    %1500 = vmatpush1.msra.mxu0 %v1475
    %1501 = vmatprep.subr.mxu0 0.0
    %1502 = vmatpush1.msra.mxu0 %v1476
    %1503 = vmatprep.subr.mxu0 0.0
    %1504 = vmatpush1.msra.mxu0 %v1477
    %1505 = vmatprep.subr.mxu0 0.0
    %1506 = vmatpush1.msra.mxu0 %v1478
    %1507 = vmatprep.subr.mxu0 0.0
    %1508 = vmatpush1.msra.mxu0 %v1479
    %1509 = vmatprep.subr.mxu0 0.0
    %1510 = vmatpush1.msra.mxu0 %v1480
    %1511 = vmatprep.subr.mxu0 0.0
    %1512 = vmatpush1.msra.mxu0 %v1481
    %1513 = vmatprep.subr.mxu0 0.0
    %1514 = vmatpush1.msra.mxu0 %v1482
    %1515 = vmatprep.subr.mxu0 0.0
    %1516 = vmatpush1.msra.mxu0 %v1483
    %1517 = vmatprep.subr.mxu0 0.0
    %1518 = vmatpush1.msra.mxu0 %v1484
    %1519 = vmatprep.subr.mxu0 0.0
    %1520 = vmatpush1.msra.mxu0 %v1485
    %1521 = vmatprep.subr.mxu0 0.0
    %1522 = vmatpush1.msra.mxu0 %v1486
    %1523 = vmatprep.subr.mxu0 0.0
    %1524 = vmatpush1.msra.mxu0 %v1487
    %1525 = vmatprep.subr.mxu0 0.0
    %1526 = vmatpush1.msra.mxu0 0.0
    %1527 = vmatprep.subr.mxu0 0.0
    %1528 = vmatpush1.msra.mxu0 0.0
    %1529 = vmatprep.subr.mxu0 0.0
    %1530 = vmatpush1.msra.mxu0 0.0
    %1531 = vmatprep.subr.mxu0 0.0
    %1532 = vmatpush1.msra.mxu0 0.0
    %1533 = vmatprep.subr.mxu0 0.0
    %1534 = vmatpush1.msra.mxu0 0.0
    %1535 = vmatprep.subr.mxu0 0.0
    %1536 = vmatpush1.msra.mxu0 0.0
    %1537 = vmatprep.subr.mxu0 0.0
    %1538 = vmatpush1.msra.mxu0 0.0
    %1539 = vmatprep.subr.mxu0 0.0
    %1540 = vmatpush1.msra.mxu0 0.0
    %1541 = vmatprep.subr.mxu0 0.0
    %1542 = vmatpush1.msra.mxu0 0.0
    %1543 = vmatprep.subr.mxu0 0.0
    %1544 = vmatpush1.msra.mxu0 0.0
    %1545 = vmatprep.subr.mxu0 0.0
    %1546 = vmatpush1.msra.mxu0 0.0
    %1547 = vmatprep.subr.mxu0 0.0
    %1548 = vmatpush1.msra.mxu0 0.0
    %1549 = vmatprep.subr.mxu0 0.0
    %1550 = vmatpush1.msra.mxu0 0.0
    %1551 = vmatprep.subr.mxu0 0.0
    %1552 = vmatpush1.msra.mxu0 0.0
    %1553 = vmatprep.subr.mxu0 0.0
    %1554 = vmatpush1.msra.mxu0 0.0
    %1555 = vmatprep.subr.mxu0 0.0
    %1556 = vmatpush1.msra.mxu0 0.0
    %1557 = vmatprep.mubr.f32.mxu0 0.0
    %1558 = vmatmul.mubr.f32.gmra.mrb[0].mxu0 %v1439
    %v1559 = vpop.f32.mrb[0].mxu0
    %v1560 = vadd.f32 %v1492, %v1559
    %v1561 = vpop.f32.mrb[0].mxu0
    %1562 = vmatprep.mubr.f32.mxu0 0.0
    %1563 = vmatmul.mubr.f32.gmra.mrb[0].mxu0 %v1440
    %v1564 = vpop.f32.mrb[0].mxu0
    %v1565 = vadd.f32 %v1492, %v1564
    %v1566 = vpop.f32.mrb[0].mxu0
    %1567 = vmatprep.mubr.f32.mxu0 0.0
    %1568 = vmatmul.mubr.f32.gmra.mrb[0].mxu0 %v1441
    %v1569 = vpop.f32.mrb[0].mxu0
    %v1570 = vadd.f32 %v1492, %v1569
    %v1571 = vpop.f32.mrb[0].mxu0
    %1572 = vmatprep.mubr.f32.mxu0 0.0
    %1573 = vmatmul.mubr.f32.gmra.mrb[0].mxu0 %v1442
    %v1574 = vpop.f32.mrb[0].mxu0
    %v1575 = vadd.f32 %v1492, %v1574
    %v1576 = vpop.f32.mrb[0].mxu0
    %1577 = vmatprep.mubr.f32.mxu0 0.0
    %1578 = vmatmul.mubr.f32.gmra.mrb[0].mxu0 %v1443
    %v1579 = vpop.f32.mrb[0].mxu0
    %v1580 = vadd.f32 %v1492, %v1579
    %v1581 = vpop.f32.mrb[0].mxu0
    %1582 = vmatprep.mubr.f32.mxu0 0.0
    %1583 = vmatmul.mubr.f32.gmra.mrb[0].mxu0 %v1444
    %v1584 = vpop.f32.mrb[0].mxu0
    %v1585 = vadd.f32 %v1492, %v1584
    %v1586 = vpop.f32.mrb[0].mxu0
    %1587 = vmatprep.mubr.f32.mxu0 0.0
    %1588 = vmatmul.mubr.f32.gmra.mrb[0].mxu0 %v1445
    %v1589 = vpop.f32.mrb[0].mxu0
    %v1590 = vadd.f32 %v1492, %v1589
    %v1591 = vpop.f32.mrb[0].mxu0
    %1592 = vmatprep.mubr.f32.mxu0 0.0
    %1593 = vmatmul.mubr.f32.gmra.mrb[0].mxu0 %v1446
    %v1594 = vpop.f32.mrb[0].mxu0
    %v1595 = vadd.f32 %v1492, %v1594
    %v1596 = vpop.f32.mrb[0].mxu0
    %1597 = vmatprep.mubr.f32.mxu0 0.0
    %1598 = vmatmul.mubr.f32.gmra.mrb[0].mxu0 %v1447
    %v1599 = vpop.f32.mrb[0].mxu0
    %v1600 = vadd.f32 %v1492, %v1599
    %v1601 = vpop.f32.mrb[0].mxu0
    %1602 = vmatprep.mubr.f32.mxu0 0.0
    %1603 = vmatmul.mubr.f32.gmra.mrb[0].mxu0 %v1448
    %v1604 = vpop.f32.mrb[0].mxu0
    %v1605 = vadd.f32 %v1492, %v1604
    %v1606 = vpop.f32.mrb[0].mxu0
    %1607 = vmatprep.mubr.f32.mxu0 0.0
    %1608 = vmatmul.mubr.f32.gmra.mrb[0].mxu0 %v1449
    %v1609 = vpop.f32.mrb[0].mxu0
    %v1610 = vadd.f32 %v1492, %v1609
    %v1611 = vpop.f32.mrb[0].mxu0
    %1612 = vmatprep.mubr.f32.mxu0 0.0
    %1613 = vmatmul.mubr.f32.gmra.mrb[0].mxu0 %v1450
    %v1614 = vpop.f32.mrb[0].mxu0
    %v1615 = vadd.f32 %v1492, %v1614
    %v1616 = vpop.f32.mrb[0].mxu0
    %1617 = vmatprep.mubr.f32.mxu0 0.0
    %1618 = vmatmul.mubr.f32.gmra.mrb[0].mxu0 %v1451
    %v1619 = vpop.f32.mrb[0].mxu0
    %v1620 = vadd.f32 %v1492, %v1619
    %v1621 = vpop.f32.mrb[0].mxu0
    %1622 = vmatprep.mubr.f32.mxu0 0.0
    %1623 = vmatmul.mubr.f32.gmra.mrb[0].mxu0 %v1452
    %v1624 = vpop.f32.mrb[0].mxu0
    %v1625 = vadd.f32 %v1492, %v1624
    %v1626 = vpop.f32.mrb[0].mxu0
    %1627 = vmatprep.mubr.f32.mxu0 0.0
    %1628 = vmatmul.mubr.f32.gmra.mrb[0].mxu0 %v1453
    %v1629 = vpop.f32.mrb[0].mxu0
    %v1630 = vadd.f32 %v1492, %v1629
    %v1631 = vpop.f32.mrb[0].mxu0
    %1632 = vmatprep.mubr.f32.mxu0 0.0
    %1633 = vmatmul.mubr.f32.gmra.mrb[0].mxu0 %v1454
    %v1634 = vpop.f32.mrb[0].mxu0
    %v1635 = vadd.f32 %v1492, %v1634
    %v1636 = vpop.f32.mrb[0].mxu0
    %1637 = vmatprep.mubr.f32.mxu0 0.0
    %1638 = vmatmul.mubr.f32.gmra.mrb[0].mxu0 %v1455
    %v1639 = vpop.f32.mrb[0].mxu0
    %v1640 = vadd.f32 %v1492, %v1639
    %v1641 = vpop.f32.mrb[0].mxu0
    %1642 = vmatprep.mubr.f32.mxu0 0.0
    %1643 = vmatmul.mubr.f32.gmra.mrb[0].mxu0 %v1456
    %v1644 = vpop.f32.mrb[0].mxu0
    %v1645 = vadd.f32 %v1492, %v1644
    %v1646 = vpop.f32.mrb[0].mxu0
    %1647 = vmatprep.mubr.f32.mxu0 0.0
    %1648 = vmatmul.mubr.f32.gmra.mrb[0].mxu0 %v1457
    %v1649 = vpop.f32.mrb[0].mxu0
    %v1650 = vadd.f32 %v1492, %v1649
    %v1651 = vpop.f32.mrb[0].mxu0
    %1652 = vmatprep.mubr.f32.mxu0 0.0
    %1653 = vmatmul.mubr.f32.gmra.mrb[0].mxu0 %v1458
    %v1654 = vpop.f32.mrb[0].mxu0
    %v1655 = vadd.f32 %v1492, %v1654
    %v1656 = vpop.f32.mrb[0].mxu0
    %1657 = vmatprep.mubr.f32.mxu0 0.0
    %1658 = vmatmul.mubr.f32.gmra.mrb[0].mxu0 %v1459
    %v1659 = vpop.f32.mrb[0].mxu0
    %v1660 = vadd.f32 %v1492, %v1659
    %v1661 = vpop.f32.mrb[0].mxu0
    %1662 = vmatprep.mubr.f32.mxu0 0.0
    %1663 = vmatmul.mubr.f32.gmra.mrb[0].mxu0 %v1460
    %v1664 = vpop.f32.mrb[0].mxu0
    %v1665 = vadd.f32 %v1492, %v1664
    %v1666 = vpop.f32.mrb[0].mxu0
    %1667 = vmatprep.mubr.f32.mxu0 0.0
    %1668 = vmatmul.mubr.f32.gmra.mrb[0].mxu0 %v1461
    %v1669 = vpop.f32.mrb[0].mxu0
    %v1670 = vadd.f32 %v1492, %v1669
    %v1671 = vpop.f32.mrb[0].mxu0
    %1672 = vmatprep.mubr.f32.mxu0 0.0
    %1673 = vmatmul.mubr.f32.gmra.mrb[0].mxu0 %v1462
    %v1674 = vpop.f32.mrb[0].mxu0
    %v1675 = vadd.f32 %v1492, %v1674
    %v1676 = vpop.f32.mrb[0].mxu0
    %1677 = vmatprep.mubr.f32.mxu0 0.0
    %1678 = vmatmul.mubr.f32.gmra.mrb[0].mxu0 %v1463
    %v1679 = vpop.f32.mrb[0].mxu0
    %v1680 = vadd.f32 %v1492, %v1679
    %v1681 = vpop.f32.mrb[0].mxu0
    %1682 = vmatprep.mubr.f32.mxu0 0.0
    %1683 = vmatmul.mubr.f32.gmra.mrb[0].mxu0 %v1464
    %v1684 = vpop.f32.mrb[0].mxu0
    %v1685 = vadd.f32 %v1492, %v1684
    %v1686 = vpop.f32.mrb[0].mxu0
    %1687 = vmatprep.mubr.f32.mxu0 0.0
    %1688 = vmatmul.mubr.f32.gmra.mrb[0].mxu0 %v1465
    %v1689 = vpop.f32.mrb[0].mxu0
    %v1690 = vadd.f32 %v1492, %v1689
    %v1691 = vpop.f32.mrb[0].mxu0
    %1692 = vmatprep.mubr.f32.mxu0 0.0
    %1693 = vmatmul.mubr.f32.gmra.mrb[0].mxu0 %v1466
    %v1694 = vpop.f32.mrb[0].mxu0
    %v1695 = vadd.f32 %v1492, %v1694
    %v1696 = vpop.f32.mrb[0].mxu0
    %1697 = vmatprep.mubr.f32.mxu0 0.0
    %1698 = vmatmul.mubr.f32.gmra.mrb[0].mxu0 %v1467
    %v1699 = vpop.f32.mrb[0].mxu0
    %v1700 = vadd.f32 %v1492, %v1699
    %v1701 = vpop.f32.mrb[0].mxu0
    %1702 = vmatprep.mubr.f32.mxu0 0.0
    %1703 = vmatmul.mubr.f32.gmra.mrb[0].mxu0 %v1468
    %v1704 = vpop.f32.mrb[0].mxu0
    %v1705 = vadd.f32 %v1492, %v1704
    %v1706 = vpop.f32.mrb[0].mxu0
    %1707 = vmatprep.mubr.f32.mxu0 0.0
    %1708 = vmatmul.mubr.f32.gmra.mrb[0].mxu0 %v1469
    %v1709 = vpop.f32.mrb[0].mxu0
    %v1710 = vadd.f32 %v1492, %v1709
    %v1711 = vpop.f32.mrb[0].mxu0
    %1712 = vmatprep.mubr.f32.mxu0 0.0
    %1713 = vmatmul.mubr.f32.gmra.mrb[0].mxu0 %v1470
    %v1714 = vpop.f32.mrb[0].mxu0
    %v1715 = vadd.f32 %v1492, %v1714
    %v1716 = vpop.f32.mrb[0].mxu0
    %1717 = vdwg.mxu0
    %v1718 = vtanh.pop %v1560
    %v1719 = vtanh.pop %v1565
    %v1720 = vtanh.pop %v1570
    %v1721 = vtanh.pop %v1575
    %v1722 = vtanh.pop %v1580
    %v1723 = vtanh.pop %v1585
    %v1724 = vtanh.pop %v1590
    %v1725 = vtanh.pop %v1595
    %v1726 = vtanh.pop %v1600
    %v1727 = vtanh.pop %v1605
    %v1728 = vtanh.pop %v1610
    %v1729 = vtanh.pop %v1615
    %v1730 = vtanh.pop %v1620
    %v1731 = vtanh.pop %v1625
    %v1732 = vtanh.pop %v1630
    %v1733 = vtanh.pop %v1635
    %v1734 = vtanh.pop %v1640
    %v1735 = vtanh.pop %v1645
    %v1736 = vtanh.pop %v1650
    %v1737 = vtanh.pop %v1655
    %v1738 = vtanh.pop %v1660
    %v1739 = vtanh.pop %v1665
    %v1740 = vtanh.pop %v1670
    %v1741 = vtanh.pop %v1675
    %v1742 = vtanh.pop %v1680
    %v1743 = vtanh.pop %v1685
    %v1744 = vtanh.pop %v1690
    %v1745 = vtanh.pop %v1695
    %v1746 = vtanh.pop %v1700
    %v1747 = vtanh.pop %v1705
    %v1748 = vtanh.pop %v1710
    %v1749 = vtanh.pop %v1715
    %1750 = vst [vmem:[%s3] sm:$0xff] %v1718
    %1751 = vst [vmem:[%s3 + $0x8] sm:$0xff] %v1719
    %1752 = vst [vmem:[%s3 + $0x10] sm:$0xff] %v1720
    %1753 = vst [vmem:[%s3 + $0x18] sm:$0xff] %v1721
    %1754 = vst [vmem:[%s3 + $0x20] sm:$0xff] %v1722
    %1755 = vst [vmem:[%s3 + $0x28] sm:$0xff] %v1723
    %1756 = vst [vmem:[%s3 + $0x30] sm:$0xff] %v1724
    %1757 = vst [vmem:[%s3 + $0x38] sm:$0xff] %v1725
    %1758 = vst [vmem:[%s3 + $0x40] sm:$0xff] %v1726
    %1759 = vst [vmem:[%s3 + $0x48] sm:$0xff] %v1727
    %1760 = vst [vmem:[%s3 + $0x50] sm:$0xff] %v1728
    %1761 = vst [vmem:[%s3 + $0x58] sm:$0xff] %v1729
    %1762 = vst [vmem:[%s3 + $0x60] sm:$0xff] %v1730
    %1763 = vst [vmem:[%s3 + $0x68] sm:$0xff] %v1731
    %1764 = vst [vmem:[%s3 + $0x70] sm:$0xff] %v1732
    %1765 = vst [vmem:[%s3 + $0x78] sm:$0xff] %v1733
    %1766 = vst [vmem:[%s3 + $0x80] sm:$0xff] %v1734
    %1767 = vst [vmem:[%s3 + $0x88] sm:$0xff] %v1735
    %1768 = vst [vmem:[%s3 + $0x90] sm:$0xff] %v1736
    %1769 = vst [vmem:[%s3 + $0x98] sm:$0xff] %v1737
    %1770 = vst [vmem:[%s3 + $0xa0] sm:$0xff] %v1738
    %1771 = vst [vmem:[%s3 + $0xa8] sm:$0xff] %v1739
    %1772 = vst [vmem:[%s3 + $0xb0] sm:$0xff] %v1740
    %1773 = vst [vmem:[%s3 + $0xb8] sm:$0xff] %v1741
    %1774 = vst [vmem:[%s3 + $0xc0] sm:$0xff] %v1742
    %1775 = vst [vmem:[%s3 + $0xc8] sm:$0xff] %v1743
    %1776 = vst [vmem:[%s3 + $0xd0] sm:$0xff] %v1744
    %1777 = vst [vmem:[%s3 + $0xd8] sm:$0xff] %v1745
    %1778 = vst [vmem:[%s3 + $0xe0] sm:$0xff] %v1746
    %1779 = vst [vmem:[%s3 + $0xe8] sm:$0xff] %v1747
    %1780 = vst [vmem:[%s3 + $0xf0] sm:$0xff] %v1748
    %1781 = vst [vmem:[%s3 + $0xf8] sm:$0xff] %v1749
    // Predicated region
    $region18: #{actor_forward.1} parent=1 // pred_check
      _
    $region19: #{actor_forward.1} parent=1 // pred_check_branch
      %1783 = sbr.rel (0) target = $region21
    $region20: #{actor_forward.1} parent=1 // pred_region
      _
    $region21: #{actor_forward.1} parent=1 // pred_fallthru
      _
    // Predicated region
    $region22: #{actor_forward.1} parent=1 // pred_check
      _
    $region23: #{actor_forward.1} parent=1 // pred_check_branch
      %1785 = sbr.rel (0) target = $region25
    $region24: #{actor_forward.1} parent=1 // pred_region
      _
    $region25: #{actor_forward.1} parent=1 // pred_fallthru
      _
    %1786 = vsyncpa [#allocation3], 1

</llo_original>
